<compile_context>
chip_gen: v7x
topology: tpu7x:2x2x1
jax: 0.10.0
libtpu: 0.0.40
codegen_flags: <defaults>
</compile_context>

<pallas_src>
import jax
import jax.numpy as jnp
from jax.experimental import pallas as pl
from jax.experimental.pallas import tpu as pltpu

MSG_NUM = 3
EMB_DIM = 64
MSG_DIM = 64
NODE_DIM = 7
EDGE_DIM = 4
OUT_DIM = 3
OUT_PAD = 128  # lane-dense padded decoder width (sliced to OUT_DIM in wrapper)


def _gconv_kernel(
    x_ref,       # (N, NODE_DIM) f32   raw node features
    ea_ref,      # (E, EDGE_DIM) f32   raw edge features
    adj_ref,     # (N, N) f32          in-edge counts: Adj[i, j] = #edges j -> i
    sb_ref,      # (N, E) f32          binary scatter: Sb[i, e] = 1 if dst(e) == i
    wemb_ref,    # (2, 8, EMB) f32     [node_embed W^T (rows 0:7) ; edge_embed W^T (rows 0:4)]
    bias_ref,    # (9, 128) f32        rows: bn, bea, be_0..2, bu_0..2, bd(padded)
    wround_ref,  # (3*MSG_NUM, EMB, EMB) f32  per round k: [Wex_k, Wupd_x_k, Wupd_aggr_k]
    wmix_ref,    # (EMB, OUT_PAD + MSG_NUM*MSG) f32  [decoder W^T padded | Wee_0|Wee_1|Wee_2]
    out_ref,     # (N, OUT_PAD) f32
):
    f32 = jnp.float32
    n = x_ref.shape[0]

    # --- static slices of the packed operands (no runtime cost) ---
    wnT = wemb_ref[0, :NODE_DIM, :]                 # (NODE_DIM, EMB)
    weaT = wemb_ref[1, :EDGE_DIM, :]                # (EDGE_DIM, EMB)
    bn = bias_ref[0:1, :EMB_DIM]                    # (1, EMB)
    bea = bias_ref[1:2, :EMB_DIM]                   # (1, EMB)
    bd = bias_ref[8:9, :]                           # (1, OUT_PAD)
    wdT = wmix_ref[:, :OUT_PAD]                     # (EMB, OUT_PAD)
    wee_cat = wmix_ref[:, OUT_PAD:]                 # (EMB, MSG_NUM*MSG)

    # --- node / edge embeddings + ReLU (f32) ---
    x = jnp.maximum(
        jnp.dot(x_ref[...], wnT, preferred_element_type=f32) + bn, 0.0
    )                                               # (N, EMB)
    ea = jnp.maximum(
        jnp.dot(ea_ref[...], weaT, preferred_element_type=f32) + bea, 0.0
    )                                               # (E, EMB)

    adj = adj_ref[...]                              # (N, N)
    sb = sb_ref[...]                                # (N, E)

    # Degree-based mean normalizers derived in-kernel; broadcasts hoisted out
    # of the unrolled round loop (JAX does not CSE broadcast_in_dim).
    deg = jnp.sum(adj, axis=1, keepdims=True)                       # (N, 1)
    inv_deg = jnp.broadcast_to(1.0 / jnp.maximum(deg, 1.0), (n, MSG_DIM))
    mask = jnp.broadcast_to((deg > 0.0).astype(f32), (n, MSG_DIM))  # 0 for isolated nodes

    # Per-node unnormalized sum of relu'd edge embeddings over incoming edges
    # (the only E-sized matmul of the whole forward).
    ea_sum = jnp.dot(sb, ea, preferred_element_type=f32)            # (N, EMB)

    # Loop-invariant edge contribution for ALL rounds in one lane-dense
    # 192-wide matmul: ea_sum @ [Wee_0 | Wee_1 | Wee_2].
    ea_contrib = jnp.dot(ea_sum, wee_cat, preferred_element_type=f32)  # (N, 3*MSG)

    # --- MSG_NUM rounds of RelPosConv (static unroll, no concats) ---
    for k in range(MSG_NUM):
        be_k = bias_ref[2 + k:3 + k, :MSG_DIM]       # (1, MSG)
        bu_k = bias_ref[5 + k:6 + k, :EMB_DIM]       # (1, EMB)
        wex_k = wround_ref[3 * k + 0]                # (EMB, MSG)
        wux_k = wround_ref[3 * k + 1]                # (EMB, EMB)
        wua_k = wround_ref[3 * k + 2]                # (MSG, EMB)

        # Unnormalized neighbor sum of current node features.
        ax = jnp.dot(adj, x, preferred_element_type=f32)             # (N, EMB)

        # Mean-aggregated linear message (bias only where deg > 0).
        aggr = (
            inv_deg
            * (
                jnp.dot(ax, wex_k, preferred_element_type=f32)
                + ea_contrib[:, k * MSG_DIM:(k + 1) * MSG_DIM]
            )
            + mask * be_k
        )                                                            # (N, MSG)

        # Update MLP as split matmuls (no lane-axis concat), then ReLU.
        x = jnp.maximum(
            jnp.dot(x, wux_k, preferred_element_type=f32)
            + jnp.dot(aggr, wua_k, preferred_element_type=f32)
            + bu_k,
            0.0,
        )                                                            # (N, EMB)

    # --- decoder (lane-dense padded output) ---
    out_ref[...] = jnp.dot(x, wdT, preferred_element_type=f32) + bd


def build_graph_structure(edge_index, num_nodes):
    """Dense structural matrices for a fixed topology (build once, reuse)."""
    src = edge_index[0]
    dst = edge_index[1]
    node_ids = jnp.arange(num_nodes, dtype=dst.dtype)
    sb = (dst[None, :] == node_ids[:, None]).astype(jnp.float32)        # (N, E) binary
    adj = jnp.zeros((num_nodes, num_nodes), jnp.float32).at[dst, src].add(1.0)  # (N, N)
    return adj, sb


def gconv_model_relpos(x, edge_attr, adj, sb, packed):
    """Forward pass of GCONV_Model_RelPos (single grid-less Pallas call)."""
    n = x.shape[0]
    inputs = (
        x, edge_attr, adj, sb,
        packed["wemb"], packed["bias"], packed["wround"], packed["wmix"],
    )
    vmem_spec = pl.BlockSpec(memory_space=pltpu.MemorySpace.VMEM)
    out_pad = pl.pallas_call(
        _gconv_kernel,
        out_shape=jax.ShapeDtypeStruct((n, OUT_PAD), jnp.float32),
        in_specs=[vmem_spec] * len(inputs),
        out_specs=vmem_spec,
        # For non-toy N: add a grid over node-row blocks ("parallel") and the
        # adjacency/E reduction axis ("arbitrary"), with vmem_limit_bytes sized
        # per generation (v7x 64 MiB physical, v5e 16 MiB default scoped).
    )(*inputs)
    return out_pad[:, :OUT_DIM]


def init_params(key):
    """Deterministic synthetic parameters matching the torch module's shapes."""
    ks = jax.random.split(key, 4)

    def lin(k, fan_in, fan_out):
        # weight stored transposed (fan_in, fan_out) for in-kernel x @ W^T
        kw, kb = jax.random.split(k)
        lim = 1.0 / jnp.sqrt(fan_in)
        w = jax.random.uniform(kw, (fan_in, fan_out), jnp.float32, -lim, lim)
        b = jax.random.uniform(kb, (1, fan_out), jnp.float32, -lim, lim)
        return w, b

    wnT, bn = lin(ks[0], NODE_DIM, EMB_DIM)
    weaT, bea = lin(ks[1], EDGE_DIM, EMB_DIM)

    wmsgT, be, wupdT, bu = [], [], [], []
    conv_keys = jax.random.split(ks[2], MSG_NUM)
    for k in range(MSG_NUM):
        k_edge, k_upd = jax.random.split(conv_keys[k])
        # edge_mlp: Linear(2*emb_dim -> msg_dim); rows ordered [x_j | edge_attr]
        wm, bm = lin(k_edge, 2 * EMB_DIM, MSG_DIM)
        # update_mlp: Linear(emb_dim + msg_dim -> emb_dim); rows ordered [x | aggr]
        wu, bu_k = lin(k_upd, EMB_DIM + MSG_DIM, EMB_DIM)
        wmsgT.append(wm)
        be.append(bm)
        wupdT.append(wu)
        bu.append(bu_k)

    wdT, bd = lin(ks[3], EMB_DIM, OUT_DIM)

    return {
        "wnT": wnT, "bn": bn,
        "weaT": weaT, "bea": bea,
        "wmsgT": jnp.stack(wmsgT), "be": jnp.stack(be),
        "wupdT": jnp.stack(wupdT), "bu": jnp.stack(bu),
        "wdT": wdT, "bd": bd,
    }


def pack_params(p):
    """Pack parameters into the 4 slabs the kernel expects (done once)."""
    # Embedding weights, zero-padded to a common (8, EMB) and stacked.
    wemb = jnp.zeros((2, 8, EMB_DIM), jnp.float32)
    wemb = wemb.at[0, :NODE_DIM, :].set(p["wnT"]).at[1, :EDGE_DIM, :].set(p["weaT"])

    # All biases in one (9, 128) slab.
    bias = jnp.zeros((9, 128), jnp.float32)
    bias = bias.at[0, :EMB_DIM].set(p["bn"][0])
    bias = bias.at[1, :EMB_DIM].set(p["bea"][0])
    bias = bias.at[2:5, :MSG_DIM].set(p["be"][:, 0, :])
    bias = bias.at[5:8, :EMB_DIM].set(p["bu"][:, 0, :])
    bias = bias.at[8, :OUT_DIM].set(p["bd"][0])

    # Per-round 64x64 weights: for round k -> [Wex_k, Wupd_x_k, Wupd_aggr_k].
    blocks = []
    for k in range(MSG_NUM):
        blocks.append(p["wmsgT"][k, :EMB_DIM, :])    # Wex_k   (x_j rows of edge_mlp)
        blocks.append(p["wupdT"][k, :EMB_DIM, :])    # Wupd_x_k
        blocks.append(p["wupdT"][k, EMB_DIM:, :])    # Wupd_aggr_k
    wround = jnp.stack(blocks, axis=0)               # (3*MSG_NUM, EMB, EMB)

    # Decoder (padded lane-dense) + round-batched edge weights in one slab.
    wee_cat = jnp.concatenate(
        [p["wmsgT"][k, EMB_DIM:, :] for k in range(MSG_NUM)], axis=1
    )                                                # (EMB, MSG_NUM*MSG)
    wd_pad = jnp.zeros((EMB_DIM, OUT_PAD), jnp.float32).at[:, :OUT_DIM].set(p["wdT"])
    wmix = jnp.concatenate([wd_pad, wee_cat], axis=1)  # (EMB, OUT_PAD + MSG_NUM*MSG)

    return {"wemb": wemb, "bias": bias, "wround": wround, "wmix": wmix}


def gconv_reference(x, edge_attr, edge_index, p):
    """Pure-JAX per-edge reference (mirrors the PyTorch module in f32)."""
    src, dst = edge_index[0], edge_index[1]
    n = x.shape[0]
    h = jax.nn.relu(x @ p["wnT"] + p["bn"])
    ea = jax.nn.relu(edge_attr @ p["weaT"] + p["bea"])
    deg = jnp.zeros((n,), jnp.float32).at[dst].add(1.0)
    for k in range(MSG_NUM):
        msg = jnp.concatenate([h[src], ea], axis=1) @ p["wmsgT"][k] + p["be"][k]
        summed = jnp.zeros((n, MSG_DIM), jnp.float32).at[dst].add(msg)
        aggr = summed / jnp.maximum(deg, 1.0)[:, None]       # PyG 'mean' (0 if deg=0)
        h = jax.nn.relu(jnp.concatenate([h, aggr], axis=1) @ p["wupdT"][k] + p["bu"][k])
    return h @ p["wdT"] + p["bd"]


if __name__ == "__main__":
    key = jax.random.PRNGKey(0)
    k_params, k_x, k_ea, k_src, k_dst = jax.random.split(key, 5)

    N, E = 16, 32
    params = init_params(k_params)
    packed = pack_params(params)                 # packed once, reused every forward

    x = jax.random.normal(k_x, (N, NODE_DIM), jnp.float32)
    edge_attr = jax.random.normal(k_ea, (E, EDGE_DIM), jnp.float32)
    src = jax.random.randint(k_src, (E,), 0, N, jnp.int32)
    dst = jax.random.randint(k_dst, (E,), 0, N, jnp.int32)
    edge_index = jnp.stack([src, dst])           # (2, E), row 0 = src, row 1 = dst

    adj, sb = build_graph_structure(edge_index, N)  # built once per topology

    out = gconv_model_relpos(x, edge_attr, adj, sb, packed)
    jax.block_until_ready(out)
    assert out.shape == (N, OUT_DIM)

    ref = gconv_reference(x, edge_attr, edge_index, params)
    assert bool(jnp.allclose(out, ref, atol=1e-3, rtol=1e-3)), "kernel != reference"

    print("KERNEL_OK")
</pallas_src>

<mosaic_0001>
module attributes {stable_mosaic.version = 11 : i64} {
  func.func @_gconv_kernel(%arg0: memref<16x7xf32, #tpu.memory_space<vmem>>, %arg1: memref<32x4xf32, #tpu.memory_space<vmem>>, %arg2: memref<16x16xf32, #tpu.memory_space<vmem>>, %arg3: memref<16x32xf32, #tpu.memory_space<vmem>>, %arg4: memref<2x8x64xf32, #tpu.memory_space<vmem>>, %arg5: memref<9x128xf32, #tpu.memory_space<vmem>>, %arg6: memref<9x64x64xf32, #tpu.memory_space<vmem>>, %arg7: memref<64x320xf32, #tpu.memory_space<vmem>>, %arg8: memref<16x128xf32, #tpu.memory_space<vmem>>) attributes {dimension_semantics = [], scalar_prefetch = 0 : i64, scratch_operands = 0 : i64, tpu.core_type = #tpu.core_type<tc>} {
    %c0 = arith.constant 0 : index
    %c0_0 = arith.constant 0 : index
    %c0_1 = arith.constant 0 : index
    %0 = vector.load %arg4[%c0, %c0_0, %c0_1] : memref<2x8x64xf32, #tpu.memory_space<vmem>>, vector<1x7x64xf32>
    %1 = vector.shape_cast %0 : vector<1x7x64xf32> to vector<7x64xf32>
    %c1 = arith.constant 1 : index
    %c0_2 = arith.constant 0 : index
    %c0_3 = arith.constant 0 : index
    %2 = vector.load %arg4[%c1, %c0_2, %c0_3] : memref<2x8x64xf32, #tpu.memory_space<vmem>>, vector<1x4x64xf32>
    %3 = vector.shape_cast %2 : vector<1x4x64xf32> to vector<4x64xf32>
    %c0_4 = arith.constant 0 : index
    %c0_5 = arith.constant 0 : index
    %4 = vector.load %arg5[%c0_4, %c0_5] : memref<9x128xf32, #tpu.memory_space<vmem>>, vector<1x64xf32>
    %c1_6 = arith.constant 1 : index
    %c0_7 = arith.constant 0 : index
    %5 = vector.load %arg5[%c1_6, %c0_7] : memref<9x128xf32, #tpu.memory_space<vmem>>, vector<1x64xf32>
    %c8 = arith.constant 8 : index
    %c0_8 = arith.constant 0 : index
    %6 = vector.load %arg5[%c8, %c0_8] : memref<9x128xf32, #tpu.memory_space<vmem>>, vector<1x128xf32>
    %c0_9 = arith.constant 0 : index
    %c0_10 = arith.constant 0 : index
    %7 = vector.load %arg7[%c0_9, %c0_10] : memref<64x320xf32, #tpu.memory_space<vmem>>, vector<64x128xf32>
    %c0_11 = arith.constant 0 : index
    %c128 = arith.constant 128 : index
    %8 = vector.load %arg7[%c0_11, %c128] : memref<64x320xf32, #tpu.memory_space<vmem>>, vector<64x192xf32>
    %c0_12 = arith.constant 0 : index
    %c0_13 = arith.constant 0 : index
    %9 = vector.load %arg0[%c0_12, %c0_13] : memref<16x7xf32, #tpu.memory_space<vmem>>, vector<16x7xf32>
    %cst = arith.constant dense<0.000000e+00> : vector<16x64xf32>
    %10 = tpu.matmul %9, %1, %cst {dimension_numbers = #tpu.dot_dimension_numbers<[1], [0], [0], [1], [0, 0, 1, 1], [], []>} : vector<16x7xf32>, vector<7x64xf32>, vector<16x64xf32> -> vector<16x64xf32>
    %11 = vector.broadcast %4 : vector<1x64xf32> to vector<16x64xf32>
    %12 = arith.addf %10, %11 : vector<16x64xf32>
    %cst_14 = arith.constant 0.000000e+00 : f32
    %13 = vector.broadcast %cst_14 : f32 to vector<16x64xf32>
    %14 = arith.maximumf %12, %13 : vector<16x64xf32>
    %c0_15 = arith.constant 0 : index
    %c0_16 = arith.constant 0 : index
    %15 = vector.load %arg1[%c0_15, %c0_16] : memref<32x4xf32, #tpu.memory_space<vmem>>, vector<32x4xf32>
    %cst_17 = arith.constant dense<0.000000e+00> : vector<32x64xf32>
    %16 = tpu.matmul %15, %3, %cst_17 {dimension_numbers = #tpu.dot_dimension_numbers<[1], [0], [0], [1], [0, 0, 1, 1], [], []>} : vector<32x4xf32>, vector<4x64xf32>, vector<32x64xf32> -> vector<32x64xf32>
    %17 = vector.broadcast %5 : vector<1x64xf32> to vector<32x64xf32>
    %18 = arith.addf %16, %17 : vector<32x64xf32>
    %cst_18 = arith.constant 0.000000e+00 : f32
    %19 = vector.broadcast %cst_18 : f32 to vector<32x64xf32>
    %20 = arith.maximumf %18, %19 : vector<32x64xf32>
    %c0_19 = arith.constant 0 : index
    %c0_20 = arith.constant 0 : index
    %21 = vector.load %arg2[%c0_19, %c0_20] : memref<16x16xf32, #tpu.memory_space<vmem>>, vector<16x16xf32>
    %c0_21 = arith.constant 0 : index
    %c0_22 = arith.constant 0 : index
    %22 = vector.load %arg3[%c0_21, %c0_22] : memref<16x32xf32, #tpu.memory_space<vmem>>, vector<16x32xf32>
    %cst_23 = arith.constant dense<0.000000e+00> : vector<16xf32>
    %23 = vector.multi_reduction <add>, %21, %cst_23 [1] : vector<16x16xf32> to vector<16xf32>
    %24 = vector.shape_cast %23 : vector<16xf32> to vector<16x1xf32>
    %cst_24 = arith.constant 1.000000e+00 : f32
    %25 = vector.broadcast %cst_24 : f32 to vector<16x1xf32>
    %26 = arith.maximumf %24, %25 : vector<16x1xf32>
    %cst_25 = arith.constant 1.000000e+00 : f32
    %27 = vector.broadcast %cst_25 : f32 to vector<16x1xf32>
    %28 = arith.divf %27, %26 : vector<16x1xf32>
    %29 = vector.shape_cast %28 : vector<16x1xf32> to vector<16x1xf32>
    %30 = vector.broadcast %29 : vector<16x1xf32> to vector<16x64xf32>
    %cst_26 = arith.constant 0.000000e+00 : f32
    %31 = vector.broadcast %cst_26 : f32 to vector<16x1xf32>
    %32 = arith.cmpf ogt, %24, %31 : vector<16x1xf32>
    %33 = arith.extui %32 : vector<16x1xi1> to vector<16x1xi32>
    %34 = arith.sitofp %33 : vector<16x1xi32> to vector<16x1xf32>
    %35 = vector.shape_cast %34 : vector<16x1xf32> to vector<16x1xf32>
    %36 = vector.broadcast %35 : vector<16x1xf32> to vector<16x64xf32>
    %cst_27 = arith.constant dense<0.000000e+00> : vector<16x64xf32>
    %37 = tpu.matmul %22, %20, %cst_27 {dimension_numbers = #tpu.dot_dimension_numbers<[1], [0], [0], [1], [0, 0, 1, 1], [], []>} : vector<16x32xf32>, vector<32x64xf32>, vector<16x64xf32> -> vector<16x64xf32>
    %cst_28 = arith.constant dense<0.000000e+00> : vector<16x192xf32>
    %38 = tpu.matmul %37, %8, %cst_28 {dimension_numbers = #tpu.dot_dimension_numbers<[1], [0], [0], [1], [0, 0, 1, 1], [], []>} : vector<16x64xf32>, vector<64x192xf32>, vector<16x192xf32> -> vector<16x192xf32>
    %c2 = arith.constant 2 : index
    %c0_29 = arith.constant 0 : index
    %39 = vector.load %arg5[%c2, %c0_29] : memref<9x128xf32, #tpu.memory_space<vmem>>, vector<1x64xf32>
    %c5 = arith.constant 5 : index
    %c0_30 = arith.constant 0 : index
    %40 = vector.load %arg5[%c5, %c0_30] : memref<9x128xf32, #tpu.memory_space<vmem>>, vector<1x64xf32>
    %c0_31 = arith.constant 0 : index
    %c0_32 = arith.constant 0 : index
    %c0_33 = arith.constant 0 : index
    %41 = vector.load %arg6[%c0_31, %c0_32, %c0_33] : memref<9x64x64xf32, #tpu.memory_space<vmem>>, vector<1x64x64xf32>
    %42 = vector.shape_cast %41 : vector<1x64x64xf32> to vector<64x64xf32>
    %c1_34 = arith.constant 1 : index
    %c0_35 = arith.constant 0 : index
    %c0_36 = arith.constant 0 : index
    %43 = vector.load %arg6[%c1_34, %c0_35, %c0_36] : memref<9x64x64xf32, #tpu.memory_space<vmem>>, vector<1x64x64xf32>
    %44 = vector.shape_cast %43 : vector<1x64x64xf32> to vector<64x64xf32>
    %c2_37 = arith.constant 2 : index
    %c0_38 = arith.constant 0 : index
    %c0_39 = arith.constant 0 : index
    %45 = vector.load %arg6[%c2_37, %c0_38, %c0_39] : memref<9x64x64xf32, #tpu.memory_space<vmem>>, vector<1x64x64xf32>
    %46 = vector.shape_cast %45 : vector<1x64x64xf32> to vector<64x64xf32>
    %cst_40 = arith.constant dense<0.000000e+00> : vector<16x64xf32>
    %47 = tpu.matmul %21, %14, %cst_40 {dimension_numbers = #tpu.dot_dimension_numbers<[1], [0], [0], [1], [0, 0, 1, 1], [], []>} : vector<16x16xf32>, vector<16x64xf32>, vector<16x64xf32> -> vector<16x64xf32>
    %cst_41 = arith.constant dense<0.000000e+00> : vector<16x64xf32>
    %48 = tpu.matmul %47, %42, %cst_41 {dimension_numbers = #tpu.dot_dimension_numbers<[1], [0], [0], [1], [0, 0, 1, 1], [], []>} : vector<16x64xf32>, vector<64x64xf32>, vector<16x64xf32> -> vector<16x64xf32>
    %49 = vector.extract_strided_slice %38 {offsets = [0, 0], sizes = [16, 64], strides = [1, 1]} : vector<16x192xf32> to vector<16x64xf32>
    %50 = arith.addf %48, %49 : vector<16x64xf32>
    %51 = arith.mulf %30, %50 : vector<16x64xf32>
    %52 = vector.broadcast %39 : vector<1x64xf32> to vector<16x64xf32>
    %53 = arith.mulf %36, %52 : vector<16x64xf32>
    %54 = arith.addf %51, %53 : vector<16x64xf32>
    %cst_42 = arith.constant dense<0.000000e+00> : vector<16x64xf32>
    %55 = tpu.matmul %14, %44, %cst_42 {dimension_numbers = #tpu.dot_dimension_numbers<[1], [0], [0], [1], [0, 0, 1, 1], [], []>} : vector<16x64xf32>, vector<64x64xf32>, vector<16x64xf32> -> vector<16x64xf32>
    %cst_43 = arith.constant dense<0.000000e+00> : vector<16x64xf32>
    %56 = tpu.matmul %54, %46, %cst_43 {dimension_numbers = #tpu.dot_dimension_numbers<[1], [0], [0], [1], [0, 0, 1, 1], [], []>} : vector<16x64xf32>, vector<64x64xf32>, vector<16x64xf32> -> vector<16x64xf32>
    %57 = arith.addf %55, %56 : vector<16x64xf32>
    %58 = vector.broadcast %40 : vector<1x64xf32> to vector<16x64xf32>
    %59 = arith.addf %57, %58 : vector<16x64xf32>
    %cst_44 = arith.constant 0.000000e+00 : f32
    %60 = vector.broadcast %cst_44 : f32 to vector<16x64xf32>
    %61 = arith.maximumf %59, %60 : vector<16x64xf32>
    %c3 = arith.constant 3 : index
    %c0_45 = arith.constant 0 : index
    %62 = vector.load %arg5[%c3, %c0_45] : memref<9x128xf32, #tpu.memory_space<vmem>>, vector<1x64xf32>
    %c6 = arith.constant 6 : index
    %c0_46 = arith.constant 0 : index
    %63 = vector.load %arg5[%c6, %c0_46] : memref<9x128xf32, #tpu.memory_space<vmem>>, vector<1x64xf32>
    %c3_47 = arith.constant 3 : index
    %c0_48 = arith.constant 0 : index
    %c0_49 = arith.constant 0 : index
    %64 = vector.load %arg6[%c3_47, %c0_48, %c0_49] : memref<9x64x64xf32, #tpu.memory_space<vmem>>, vector<1x64x64xf32>
    %65 = vector.shape_cast %64 : vector<1x64x64xf32> to vector<64x64xf32>
    %c4 = arith.constant 4 : index
    %c0_50 = arith.constant 0 : index
    %c0_51 = arith.constant 0 : index
    %66 = vector.load %arg6[%c4, %c0_50, %c0_51] : memref<9x64x64xf32, #tpu.memory_space<vmem>>, vector<1x64x64xf32>
    %67 = vector.shape_cast %66 : vector<1x64x64xf32> to vector<64x64xf32>
    %c5_52 = arith.constant 5 : index
    %c0_53 = arith.constant 0 : index
    %c0_54 = arith.constant 0 : index
    %68 = vector.load %arg6[%c5_52, %c0_53, %c0_54] : memref<9x64x64xf32, #tpu.memory_space<vmem>>, vector<1x64x64xf32>
    %69 = vector.shape_cast %68 : vector<1x64x64xf32> to vector<64x64xf32>
    %cst_55 = arith.constant dense<0.000000e+00> : vector<16x64xf32>
    %70 = tpu.matmul %21, %61, %cst_55 {dimension_numbers = #tpu.dot_dimension_numbers<[1], [0], [0], [1], [0, 0, 1, 1], [], []>} : vector<16x16xf32>, vector<16x64xf32>, vector<16x64xf32> -> vector<16x64xf32>
    %cst_56 = arith.constant dense<0.000000e+00> : vector<16x64xf32>
    %71 = tpu.matmul %70, %65, %cst_56 {dimension_numbers = #tpu.dot_dimension_numbers<[1], [0], [0], [1], [0, 0, 1, 1], [], []>} : vector<16x64xf32>, vector<64x64xf32>, vector<16x64xf32> -> vector<16x64xf32>
    %72 = vector.extract_strided_slice %38 {offsets = [0, 64], sizes = [16, 64], strides = [1, 1]} : vector<16x192xf32> to vector<16x64xf32>
    %73 = arith.addf %71, %72 : vector<16x64xf32>
    %74 = arith.mulf %30, %73 : vector<16x64xf32>
    %75 = vector.broadcast %62 : vector<1x64xf32> to vector<16x64xf32>
    %76 = arith.mulf %36, %75 : vector<16x64xf32>
    %77 = arith.addf %74, %76 : vector<16x64xf32>
    %cst_57 = arith.constant dense<0.000000e+00> : vector<16x64xf32>
    %78 = tpu.matmul %61, %67, %cst_57 {dimension_numbers = #tpu.dot_dimension_numbers<[1], [0], [0], [1], [0, 0, 1, 1], [], []>} : vector<16x64xf32>, vector<64x64xf32>, vector<16x64xf32> -> vector<16x64xf32>
    %cst_58 = arith.constant dense<0.000000e+00> : vector<16x64xf32>
    %79 = tpu.matmul %77, %69, %cst_58 {dimension_numbers = #tpu.dot_dimension_numbers<[1], [0], [0], [1], [0, 0, 1, 1], [], []>} : vector<16x64xf32>, vector<64x64xf32>, vector<16x64xf32> -> vector<16x64xf32>
    %80 = arith.addf %78, %79 : vector<16x64xf32>
    %81 = vector.broadcast %63 : vector<1x64xf32> to vector<16x64xf32>
    %82 = arith.addf %80, %81 : vector<16x64xf32>
    %cst_59 = arith.constant 0.000000e+00 : f32
    %83 = vector.broadcast %cst_59 : f32 to vector<16x64xf32>
    %84 = arith.maximumf %82, %83 : vector<16x64xf32>
    %c4_60 = arith.constant 4 : index
    %c0_61 = arith.constant 0 : index
    %85 = vector.load %arg5[%c4_60, %c0_61] : memref<9x128xf32, #tpu.memory_space<vmem>>, vector<1x64xf32>
    %c7 = arith.constant 7 : index
    %c0_62 = arith.constant 0 : index
    %86 = vector.load %arg5[%c7, %c0_62] : memref<9x128xf32, #tpu.memory_space<vmem>>, vector<1x64xf32>
    %c6_63 = arith.constant 6 : index
    %c0_64 = arith.constant 0 : index
    %c0_65 = arith.constant 0 : index
    %87 = vector.load %arg6[%c6_63, %c0_64, %c0_65] : memref<9x64x64xf32, #tpu.memory_space<vmem>>, vector<1x64x64xf32>
    %88 = vector.shape_cast %87 : vector<1x64x64xf32> to vector<64x64xf32>
    %c7_66 = arith.constant 7 : index
    %c0_67 = arith.constant 0 : index
    %c0_68 = arith.constant 0 : index
    %89 = vector.load %arg6[%c7_66, %c0_67, %c0_68] : memref<9x64x64xf32, #tpu.memory_space<vmem>>, vector<1x64x64xf32>
    %90 = vector.shape_cast %89 : vector<1x64x64xf32> to vector<64x64xf32>
    %c8_69 = arith.constant 8 : index
    %c0_70 = arith.constant 0 : index
    %c0_71 = arith.constant 0 : index
    %91 = vector.load %arg6[%c8_69, %c0_70, %c0_71] : memref<9x64x64xf32, #tpu.memory_space<vmem>>, vector<1x64x64xf32>
    %92 = vector.shape_cast %91 : vector<1x64x64xf32> to vector<64x64xf32>
    %cst_72 = arith.constant dense<0.000000e+00> : vector<16x64xf32>
    %93 = tpu.matmul %21, %84, %cst_72 {dimension_numbers = #tpu.dot_dimension_numbers<[1], [0], [0], [1], [0, 0, 1, 1], [], []>} : vector<16x16xf32>, vector<16x64xf32>, vector<16x64xf32> -> vector<16x64xf32>
    %cst_73 = arith.constant dense<0.000000e+00> : vector<16x64xf32>
    %94 = tpu.matmul %93, %88, %cst_73 {dimension_numbers = #tpu.dot_dimension_numbers<[1], [0], [0], [1], [0, 0, 1, 1], [], []>} : vector<16x64xf32>, vector<64x64xf32>, vector<16x64xf32> -> vector<16x64xf32>
    %95 = vector.extract_strided_slice %38 {offsets = [0, 128], sizes = [16, 64], strides = [1, 1]} : vector<16x192xf32> to vector<16x64xf32>
    %96 = arith.addf %94, %95 : vector<16x64xf32>
    %97 = arith.mulf %30, %96 : vector<16x64xf32>
    %98 = vector.broadcast %85 : vector<1x64xf32> to vector<16x64xf32>
    %99 = arith.mulf %36, %98 : vector<16x64xf32>
    %100 = arith.addf %97, %99 : vector<16x64xf32>
    %cst_74 = arith.constant dense<0.000000e+00> : vector<16x64xf32>
    %101 = tpu.matmul %84, %90, %cst_74 {dimension_numbers = #tpu.dot_dimension_numbers<[1], [0], [0], [1], [0, 0, 1, 1], [], []>} : vector<16x64xf32>, vector<64x64xf32>, vector<16x64xf32> -> vector<16x64xf32>
    %cst_75 = arith.constant dense<0.000000e+00> : vector<16x64xf32>
    %102 = tpu.matmul %100, %92, %cst_75 {dimension_numbers = #tpu.dot_dimension_numbers<[1], [0], [0], [1], [0, 0, 1, 1], [], []>} : vector<16x64xf32>, vector<64x64xf32>, vector<16x64xf32> -> vector<16x64xf32>
    %103 = arith.addf %101, %102 : vector<16x64xf32>
    %104 = vector.broadcast %86 : vector<1x64xf32> to vector<16x64xf32>
    %105 = arith.addf %103, %104 : vector<16x64xf32>
    %cst_76 = arith.constant 0.000000e+00 : f32
    %106 = vector.broadcast %cst_76 : f32 to vector<16x64xf32>
    %107 = arith.maximumf %105, %106 : vector<16x64xf32>
    %cst_77 = arith.constant dense<0.000000e+00> : vector<16x128xf32>
    %108 = tpu.matmul %107, %7, %cst_77 {dimension_numbers = #tpu.dot_dimension_numbers<[1], [0], [0], [1], [0, 0, 1, 1], [], []>} : vector<16x64xf32>, vector<64x128xf32>, vector<16x128xf32> -> vector<16x128xf32>
    %109 = vector.broadcast %6 : vector<1x128xf32> to vector<16x128xf32>
    %110 = arith.addf %108, %109 : vector<16x128xf32>
    %c0_78 = arith.constant 0 : index
    %c0_79 = arith.constant 0 : index
    %111 = vector.load %arg8[%c0_78, %c0_79] : memref<16x128xf32, #tpu.memory_space<vmem>>, vector<16x128xf32>
    tpu.vector_store %arg8[%c0_78, %c0_79], %110 {strides = array<i32>} : memref<16x128xf32, #tpu.memory_space<vmem>>, vector<16x128xf32>,
    return
  }
}

</mosaic_0001>

<llo_original>
// kernel: tpu_custom_call.1
$region0: #{tpu_custom_call.1}
  #allocation0 [shape = 'u32[]', space=smem, size = 0x4, offset = 0x4, fixed_abs, tag = 'smem constant byte address 0x4 - core index']
  #allocation1 [shape = 'u32[144,128]{1,0:T(1,128)}', space=vmem, size = 0x12000, scoped, tag = 'internal scratch']
  %s0 = inlined_call_operand.vmem [shape: f32[16,7], index: 0, kind: input, shape index: {}]
  %s1 = inlined_call_operand.vmem [shape: f32[32,4], index: 1, kind: input, shape index: {}]
  %s2 = inlined_call_operand.vmem [shape: f32[16,16], index: 2, kind: input, shape index: {}]
  %s3 = inlined_call_operand.vmem [shape: f32[16,32], index: 3, kind: input, shape index: {}]
  %s4 = inlined_call_operand.vmem [shape: f32[2,8,64], index: 4, kind: input, shape index: {}]
  %s5 = inlined_call_operand.vmem [shape: f32[9,128], index: 5, kind: input, shape index: {}]
  %s6 = inlined_call_operand.hbm [shape: f32[9,64,64], index: 6, kind: input, shape index: {}]
  %s7 = inlined_call_operand.hbm [shape: f32[64,320], index: 7, kind: input, shape index: {}]
  %s8 = inlined_call_operand.hbm [shape: f32[16,128], index: 8, kind: output, shape index: {}]
  %s9 = sld [smem:[#allocation0]]
  $region50: #{tpu_custom_call.1} parent=0
    _
  %s11 = ssub.s32 1, %s9
  %s12 = scalar_select 0, %s11, %s9
  $region1: #{tpu_custom_call.1} parent=0
    #allocation2 [shape = 'u8[294912]{0}', space=vmem, size = 0x48000, scoped, tag = 'input window, operand 6, single buffered']
    #allocation3 [shape = 's32[1]{0}', space=sflag, size = 0x4, scoped, tag = 'scoped memory for tpu_custom_call.1']
    #allocation4 [shape = 's32[1]{0}', space=sflag, size = 0x4, scoped, tag = 'scoped memory for tpu_custom_call.1']
    #allocation5 [shape = 'u8[98304]{0}', space=vmem, size = 0x18000, scoped, tag = 'input window, operand 7, single buffered']
    #allocation6 [shape = 's32[1]{0}', space=sflag, size = 0x4, scoped, tag = 'scoped memory for tpu_custom_call.1']
    #allocation7 [shape = 'u8[8192]{0}', space=vmem, size = 0x2000, scoped, tag = 'output window, operand 0, single buffered']
    %13 = vsyncpa [#allocation3], 0
    %14 = vsyncpa [#allocation6], 0
    %15 = vsyncpa [#allocation4], 0
    // Predicated region
    $region2: #{tpu_custom_call.1} parent=1 // pred_check
      _
    $region3: #{tpu_custom_call.1} parent=1 // pred_check_branch
      %17 = sbr.rel (0) target = $region5
    $region4: #{tpu_custom_call.1} parent=1 // pred_region
      _
    $region5: #{tpu_custom_call.1} parent=1 // pred_fallthru
      _
    // Predicated region
    $region6: #{tpu_custom_call.1} parent=1 // pred_check
      _
    $region7: #{tpu_custom_call.1} parent=1 // pred_check_branch
      %19 = sbr.rel (0) target = $region9
    $region8: #{tpu_custom_call.1} parent=1 // pred_region
      _
    $region9: #{tpu_custom_call.1} parent=1 // pred_fallthru
      _
    // Predicated region
    $region10: #{tpu_custom_call.1} parent=1 // pred_check
      _
    $region11: #{tpu_custom_call.1} parent=1 // pred_check_branch
      %21 = sbr.rel (0) target = $region13
    $region12: #{tpu_custom_call.1} parent=1 // pred_region
      _
    $region13: #{tpu_custom_call.1} parent=1 // pred_fallthru
      _
    // Predicated region
    $region14: #{tpu_custom_call.1} parent=1 // pred_check
      _
    $region15: #{tpu_custom_call.1} parent=1 // pred_check_branch
      %23 = sbr.rel (0) target = $region17
    $region16: #{tpu_custom_call.1} parent=1 // pred_region
      _
    $region17: #{tpu_custom_call.1} parent=1 // pred_fallthru
      _
    // Predicated region
    $region18: #{tpu_custom_call.1} parent=1 // pred_check
      _
    $region19: #{tpu_custom_call.1} parent=1 // pred_check_branch
      %25 = sbr.rel (0) target = $region21
    $region20: #{tpu_custom_call.1} parent=1 // pred_region
      _
    $region21: #{tpu_custom_call.1} parent=1 // pred_fallthru
      _
    // Predicated region
    $region22: #{tpu_custom_call.1} parent=1 // pred_check
      _
    $region23: #{tpu_custom_call.1} parent=1 // pred_check_branch
      %27 = sbr.rel (0) target = $region25
    $region24: #{tpu_custom_call.1} parent=1 // pred_region
      _
    $region25: #{tpu_custom_call.1} parent=1 // pred_fallthru
      _
    // Predicated region
    $region26: #{tpu_custom_call.1} parent=1 // pred_check
      _
    $region27: #{tpu_custom_call.1} parent=1 // pred_check_branch
      %29 = sbr.rel (0) target = $region29
    $region28: #{tpu_custom_call.1} parent=1 // pred_region
      %s31 = ssub.s32 9216, 9216
      %32 = vsyncadd [#allocation3], %s31
      %s33 = sshll.u32 [#allocation2], 4
      %s34 = int_to_ptr.vmem [resolvable:$true] %s33
      %39 = dma.hbm_to_vmem [thread:$0]  %s6, 9216, %s34, [#allocation3], 128, 128, 8
    $region29: #{tpu_custom_call.1} parent=1 // pred_fallthru
      _
    // Predicated region
    $region30: #{tpu_custom_call.1} parent=1 // pred_check
      _
    $region31: #{tpu_custom_call.1} parent=1 // pred_check_branch
      %41 = sbr.rel (0) target = $region33
    $region32: #{tpu_custom_call.1} parent=1 // pred_region
      %s43 = ssub.s32 3072, 3072
      %44 = vsyncadd [#allocation6], %s43
      %s45 = sshll.u32 [#allocation5], 4
      %s46 = int_to_ptr.vmem [resolvable:$true] %s45
      %51 = dma.hbm_to_vmem [thread:$0]  %s7, 3072, %s46, [#allocation6], 384, 384, 24
    $region33: #{tpu_custom_call.1} parent=1 // pred_fallthru
      _
    // Predicated region
    $region34: #{tpu_custom_call.1} parent=1 // pred_check
      _
    $region35: #{tpu_custom_call.1} parent=1 // pred_check_branch
      %53 = sbr.rel (0) target = $region37
    $region36: #{tpu_custom_call.1} parent=1 // pred_region
      %54 = dma.done [#allocation3], 9216
    $region37: #{tpu_custom_call.1} parent=1 // pred_fallthru
      _
    // Predicated region
    $region38: #{tpu_custom_call.1} parent=1 // pred_check
      _
    $region39: #{tpu_custom_call.1} parent=1 // pred_check_branch
      %56 = sbr.rel (0) target = $region41
    $region40: #{tpu_custom_call.1} parent=1 // pred_region
      %57 = dma.done [#allocation6], 3072
    $region41: #{tpu_custom_call.1} parent=1 // pred_fallthru
      _
    %v58 = vld [vmem:[%s4] sm:$0x7f]
    %s59 = scalar_lea.vmem %s4, 8
    %v60 = vld [vmem:[%s59] sm:$0xf]
    %v61 = vld [vmem:[%s5] sm:$0x1]
    %v62 = vld [vmem:[%s5 + $0x1] sm:$0x1]
    %v63 = vld [vmem:[%s5 + $0x8] sm:$0x1]
    %v64 = vld [vmem:[#allocation5] sm:$0xff]
    %v65 = vld [vmem:[#allocation5 + $0x18] sm:$0xff]
    %v66 = vld [vmem:[#allocation5 + $0x30] sm:$0xff]
    %v67 = vld [vmem:[#allocation5 + $0x48] sm:$0xff]
    %v68 = vld [vmem:[#allocation5 + $0x60] sm:$0xff]
    %v69 = vld [vmem:[#allocation5 + $0x78] sm:$0xff]
    %v70 = vld [vmem:[#allocation5 + $0x90] sm:$0xff]
    %v71 = vld [vmem:[#allocation5 + $0xa8] sm:$0xff]
    %v72 = vld [vmem:[#allocation5 + $0x8] sm:$0xff]
    %v73 = vld [vmem:[#allocation5 + $0x10] sm:$0xff]
    %v74 = vld [vmem:[#allocation5 + $0x20] sm:$0xff]
    %v75 = vld [vmem:[#allocation5 + $0x28] sm:$0xff]
    %v76 = vld [vmem:[#allocation5 + $0x38] sm:$0xff]
    %v77 = vld [vmem:[#allocation5 + $0x40] sm:$0xff]
    %v78 = vld [vmem:[#allocation5 + $0x50] sm:$0xff]
    %v79 = vld [vmem:[#allocation5 + $0x58] sm:$0xff]
    %v80 = vld [vmem:[#allocation5 + $0x68] sm:$0xff]
    %v81 = vld [vmem:[#allocation5 + $0x70] sm:$0xff]
    %v82 = vld [vmem:[#allocation5 + $0x80] sm:$0xff]
    %v83 = vld [vmem:[#allocation5 + $0x88] sm:$0xff]
    %v84 = vld [vmem:[#allocation5 + $0x98] sm:$0xff]
    %v85 = vld [vmem:[#allocation5 + $0xa0] sm:$0xff]
    %v86 = vld [vmem:[#allocation5 + $0xb0] sm:$0xff]
    %v87 = vld [vmem:[#allocation5 + $0xb8] sm:$0xff]
    %v88 = vld [vmem:[%s0] sm:$0xff]
    %v89 = vld [vmem:[%s0 + $0x8] sm:$0xff]
    %v90 = vlaneseq
    %v91 = vshrl.u32 %v90, 7
    %v92 = vsub.s32 0, %v91
    %v93 = vrot.slane %v61, %v92
    %vm94 = vcmask 56320
    %v96 = vsel %vm94, %v88, 0
    %v99 = vsel %vm94, %v89, 0
    %vm101 = vcmask 1046528
    %v103 = vsel %vm101, %v58, 0
    %105 = vmatprep.subr.mxu0 0.0
    %106 = vmatpush1.msra.mxu0 %v103
    %107 = vmatprep.subr.mxu0 0.0
    %108 = vmatpush1.msra.mxu0 0.0
    %109 = vmatprep.subr.mxu0 0.0
    %110 = vmatpush1.msra.mxu0 0.0
    %111 = vmatprep.subr.mxu0 0.0
    %112 = vmatpush1.msra.mxu0 0.0
    %113 = vmatprep.subr.mxu0 0.0
    %114 = vmatpush1.msra.mxu0 0.0
    %115 = vmatprep.subr.mxu0 0.0
    %116 = vmatpush1.msra.mxu0 0.0
    %117 = vmatprep.subr.mxu0 0.0
    %118 = vmatpush1.msra.mxu0 0.0
    %119 = vmatprep.subr.mxu0 0.0
    %120 = vmatpush1.msra.mxu0 0.0
    %121 = vmatprep.subr.mxu0 0.0
    %122 = vmatpush1.msra.mxu0 0.0
    %123 = vmatprep.subr.mxu0 0.0
    %124 = vmatpush1.msra.mxu0 0.0
    %125 = vmatprep.subr.mxu0 0.0
    %126 = vmatpush1.msra.mxu0 0.0
    %127 = vmatprep.subr.mxu0 0.0
    %128 = vmatpush1.msra.mxu0 0.0
    %129 = vmatprep.subr.mxu0 0.0
    %130 = vmatpush1.msra.mxu0 0.0
    %131 = vmatprep.subr.mxu0 0.0
    %132 = vmatpush1.msra.mxu0 0.0
    %133 = vmatprep.subr.mxu0 0.0
    %134 = vmatpush1.msra.mxu0 0.0
    %135 = vmatprep.subr.mxu0 0.0
    %136 = vmatpush1.msra.mxu0 0.0
    %137 = vmatprep.subr.mxu0 0.0
    %138 = vmatpush1.msra.mxu0 0.0
    %139 = vmatprep.subr.mxu0 0.0
    %140 = vmatpush1.msra.mxu0 0.0
    %141 = vmatprep.subr.mxu0 0.0
    %142 = vmatpush1.msra.mxu0 0.0
    %143 = vmatprep.subr.mxu0 0.0
    %144 = vmatpush1.msra.mxu0 0.0
    %145 = vmatprep.subr.mxu0 0.0
    %146 = vmatpush1.msra.mxu0 0.0
    %147 = vmatprep.subr.mxu0 0.0
    %148 = vmatpush1.msra.mxu0 0.0
    %149 = vmatprep.subr.mxu0 0.0
    %150 = vmatpush1.msra.mxu0 0.0
    %151 = vmatprep.subr.mxu0 0.0
    %152 = vmatpush1.msra.mxu0 0.0
    %153 = vmatprep.subr.mxu0 0.0
    %154 = vmatpush1.msra.mxu0 0.0
    %155 = vmatprep.subr.mxu0 0.0
    %156 = vmatpush1.msra.mxu0 0.0
    %157 = vmatprep.subr.mxu0 0.0
    %158 = vmatpush1.msra.mxu0 0.0
    %159 = vmatprep.subr.mxu0 0.0
    %160 = vmatpush1.msra.mxu0 0.0
    %161 = vmatprep.subr.mxu0 0.0
    %162 = vmatpush1.msra.mxu0 0.0
    %163 = vmatprep.subr.mxu0 0.0
    %164 = vmatpush1.msra.mxu0 0.0
    %165 = vmatprep.subr.mxu0 0.0
    %166 = vmatpush1.msra.mxu0 0.0
    %167 = vmatprep.subr.mxu0 0.0
    %168 = vmatpush1.msra.mxu0 0.0
    %169 = vmatprep.mubr.f32.mxu0 0.0
    %170 = vmatmul.mubr.f32.gmra.mrb[0].mxu0 %v96
    %v171 = vpop.f32.mrb[0].mxu0
    %v172 = vadd.f32 %v93, %v171
    %v173 = vpop.f32.mrb[0].mxu0
    %174 = vmatprep.mubr.f32.mxu0 0.0
    %175 = vmatmul.mubr.f32.gmra.mrb[0].mxu0 %v99
    %v176 = vpop.f32.mrb[0].mxu0
    %v177 = vadd.f32 %v93, %v176
    %v178 = vpop.f32.mrb[0].mxu0
    %179 = vdwg.mxu0
    %v180 = vmax.f32 %v172, 0.0
    %v181 = vmax.f32 %v177, 0.0
    %v182 = vld [vmem:[%s1] sm:$0xff]
    %v183 = vld [vmem:[%s1 + $0x8] sm:$0xff]
    %v184 = vld [vmem:[%s1 + $0x10] sm:$0xff]
    %v185 = vld [vmem:[%s1 + $0x18] sm:$0xff]
    %v186 = vlaneseq
    %v187 = vshrl.u32 %v186, 7
    %v188 = vsub.s32 0, %v187
    %v189 = vrot.slane %v62, %v188
    %vm190 = vcmask 31744
    %v192 = vsel %vm190, %v182, 0
    %v195 = vsel %vm190, %v183, 0
    %v198 = vsel %vm190, %v184, 0
    %v201 = vsel %vm190, %v185, 0
    %vm203 = vcmask 1043456
    %v205 = vsel %vm203, %v60, 0
    %207 = vmatprep.subr.mxu0 0.0
    %208 = vmatpush1.msra.mxu0 %v205
    %209 = vmatprep.subr.mxu0 0.0
    %210 = vmatpush1.msra.mxu0 0.0
    %211 = vmatprep.subr.mxu0 0.0
    %212 = vmatpush1.msra.mxu0 0.0
    %213 = vmatprep.subr.mxu0 0.0
    %214 = vmatpush1.msra.mxu0 0.0
    %215 = vmatprep.subr.mxu0 0.0
    %216 = vmatpush1.msra.mxu0 0.0
    %217 = vmatprep.subr.mxu0 0.0
    %218 = vmatpush1.msra.mxu0 0.0
    %219 = vmatprep.subr.mxu0 0.0
    %220 = vmatpush1.msra.mxu0 0.0
    %221 = vmatprep.subr.mxu0 0.0
    %222 = vmatpush1.msra.mxu0 0.0
    %223 = vmatprep.subr.mxu0 0.0
    %224 = vmatpush1.msra.mxu0 0.0
    %225 = vmatprep.subr.mxu0 0.0
    %226 = vmatpush1.msra.mxu0 0.0
    %227 = vmatprep.subr.mxu0 0.0
    %228 = vmatpush1.msra.mxu0 0.0
    %229 = vmatprep.subr.mxu0 0.0
    %230 = vmatpush1.msra.mxu0 0.0
    %231 = vmatprep.subr.mxu0 0.0
    %232 = vmatpush1.msra.mxu0 0.0
    %233 = vmatprep.subr.mxu0 0.0
    %234 = vmatpush1.msra.mxu0 0.0
    %235 = vmatprep.subr.mxu0 0.0
    %236 = vmatpush1.msra.mxu0 0.0
    %237 = vmatprep.subr.mxu0 0.0
    %238 = vmatpush1.msra.mxu0 0.0
    %239 = vmatprep.subr.mxu0 0.0
    %240 = vmatpush1.msra.mxu0 0.0
    %241 = vmatprep.subr.mxu0 0.0
    %242 = vmatpush1.msra.mxu0 0.0
    %243 = vmatprep.subr.mxu0 0.0
    %244 = vmatpush1.msra.mxu0 0.0
    %245 = vmatprep.subr.mxu0 0.0
    %246 = vmatpush1.msra.mxu0 0.0
    %247 = vmatprep.subr.mxu0 0.0
    %248 = vmatpush1.msra.mxu0 0.0
    %249 = vmatprep.subr.mxu0 0.0
    %250 = vmatpush1.msra.mxu0 0.0
    %251 = vmatprep.subr.mxu0 0.0
    %252 = vmatpush1.msra.mxu0 0.0
    %253 = vmatprep.subr.mxu0 0.0
    %254 = vmatpush1.msra.mxu0 0.0
    %255 = vmatprep.subr.mxu0 0.0
    %256 = vmatpush1.msra.mxu0 0.0
    %257 = vmatprep.subr.mxu0 0.0
    %258 = vmatpush1.msra.mxu0 0.0
    %259 = vmatprep.subr.mxu0 0.0
    %260 = vmatpush1.msra.mxu0 0.0
    %261 = vmatprep.subr.mxu0 0.0
    %262 = vmatpush1.msra.mxu0 0.0
    %263 = vmatprep.subr.mxu0 0.0
    %264 = vmatpush1.msra.mxu0 0.0
    %265 = vmatprep.subr.mxu0 0.0
    %266 = vmatpush1.msra.mxu0 0.0
    %267 = vmatprep.subr.mxu0 0.0
    %268 = vmatpush1.msra.mxu0 0.0
    %269 = vmatprep.subr.mxu0 0.0
    %270 = vmatpush1.msra.mxu0 0.0
    %271 = vmatprep.mubr.f32.mxu0 0.0
    %272 = vmatmul.mubr.f32.gmra.mrb[0].mxu0 %v192
    %v273 = vpop.f32.mrb[0].mxu0
    %v274 = vadd.f32 %v189, %v273
    %v275 = vpop.f32.mrb[0].mxu0
    %276 = vmatprep.mubr.f32.mxu0 0.0
    %277 = vmatmul.mubr.f32.gmra.mrb[0].mxu0 %v195
    %v278 = vpop.f32.mrb[0].mxu0
    %v279 = vadd.f32 %v189, %v278
    %v280 = vpop.f32.mrb[0].mxu0
    %281 = vmatprep.mubr.f32.mxu0 0.0
    %282 = vmatmul.mubr.f32.gmra.mrb[0].mxu0 %v198
    %v283 = vpop.f32.mrb[0].mxu0
    %v284 = vadd.f32 %v189, %v283
    %v285 = vpop.f32.mrb[0].mxu0
    %286 = vmatprep.mubr.f32.mxu0 0.0
    %287 = vmatmul.mubr.f32.gmra.mrb[0].mxu0 %v201
    %v288 = vpop.f32.mrb[0].mxu0
    %v289 = vadd.f32 %v189, %v288
    %v290 = vpop.f32.mrb[0].mxu0
    %291 = vdwg.mxu0
    %v292 = vmax.f32 %v274, 0.0
    %v293 = vmax.f32 %v279, 0.0
    %v294 = vmax.f32 %v284, 0.0
    %v295 = vmax.f32 %v289, 0.0
    %v296 = vld [vmem:[%s2] sm:$0xff]
    %v297 = vld [vmem:[%s2 + $0x8] sm:$0xff]
    %v298 = vld [vmem:[%s3] sm:$0xff]
    %v299 = vld [vmem:[%s3 + $0x8] sm:$0xff]
    %vm300 = vcmask 130048
    %v301 = vsel %vm300, %v296, 0.0
    %302 = vadd.xlane.f32.xlu0 %v301
    %v303 = vpop.xlane.xlu0 %302
    %v304 = vsel %vm300, %v297, 0.0
    %305 = vadd.xlane.f32.xlu0 %v304
    %v306 = vpop.xlane.xlu0 %305
    %v307 = vmax.f32 %v303, 1.0
    %v308 = vmax.f32 %v306, 1.0
    %v309 = vrcp.pop %v307
    %v310 = vmul.f32 1.0, %v309
    %v311 = vrcp.pop %v308
    %v312 = vmul.f32 1.0, %v311
    %vm313 = vcmp.gt.f32.partialorder %v303, 0.0
    %vm314 = vcmp.gt.f32.partialorder %v306, 0.0
    %v315 = vsel %vm313, 1, 0
    %v316 = vsel %vm314, 1, 0
    %v317 = vcvt.s32.f32 %v315
    %v318 = vcvt.s32.f32 %v316
    %vm319 = vcmask 261120
    %v321 = vsel %vm319, %v298, 0
    %v324 = vsel %vm319, %v299, 0
    %326 = vmatprep.subr.mxu0 0.0
    %327 = vmatpush1.msra.mxu0 %v292
    %328 = vmatprep.subr.mxu0 0.0
    %329 = vmatpush1.msra.mxu0 %v293
    %330 = vmatprep.subr.mxu0 0.0
    %331 = vmatpush1.msra.mxu0 %v294
    %332 = vmatprep.subr.mxu0 0.0
    %333 = vmatpush1.msra.mxu0 %v295
    %334 = vmatprep.subr.mxu0 0.0
    %335 = vmatpush1.msra.mxu0 0.0
    %336 = vmatprep.subr.mxu0 0.0
    %337 = vmatpush1.msra.mxu0 0.0
    %338 = vmatprep.subr.mxu0 0.0
    %339 = vmatpush1.msra.mxu0 0.0
    %340 = vmatprep.subr.mxu0 0.0
    %341 = vmatpush1.msra.mxu0 0.0
    %342 = vmatprep.subr.mxu0 0.0
    %343 = vmatpush1.msra.mxu0 0.0
    %344 = vmatprep.subr.mxu0 0.0
    %345 = vmatpush1.msra.mxu0 0.0
    %346 = vmatprep.subr.mxu0 0.0
    %347 = vmatpush1.msra.mxu0 0.0
    %348 = vmatprep.subr.mxu0 0.0
    %349 = vmatpush1.msra.mxu0 0.0
    %350 = vmatprep.subr.mxu0 0.0
    %351 = vmatpush1.msra.mxu0 0.0
    %352 = vmatprep.subr.mxu0 0.0
    %353 = vmatpush1.msra.mxu0 0.0
    %354 = vmatprep.subr.mxu0 0.0
    %355 = vmatpush1.msra.mxu0 0.0
    %356 = vmatprep.subr.mxu0 0.0
    %357 = vmatpush1.msra.mxu0 0.0
    %358 = vmatprep.subr.mxu0 0.0
    %359 = vmatpush1.msra.mxu0 0.0
    %360 = vmatprep.subr.mxu0 0.0
    %361 = vmatpush1.msra.mxu0 0.0
    %362 = vmatprep.subr.mxu0 0.0
    %363 = vmatpush1.msra.mxu0 0.0
    %364 = vmatprep.subr.mxu0 0.0
    %365 = vmatpush1.msra.mxu0 0.0
    %366 = vmatprep.subr.mxu0 0.0
    %367 = vmatpush1.msra.mxu0 0.0
    %368 = vmatprep.subr.mxu0 0.0
    %369 = vmatpush1.msra.mxu0 0.0
    %370 = vmatprep.subr.mxu0 0.0
    %371 = vmatpush1.msra.mxu0 0.0
    %372 = vmatprep.subr.mxu0 0.0
    %373 = vmatpush1.msra.mxu0 0.0
    %374 = vmatprep.subr.mxu0 0.0
    %375 = vmatpush1.msra.mxu0 0.0
    %376 = vmatprep.subr.mxu0 0.0
    %377 = vmatpush1.msra.mxu0 0.0
    %378 = vmatprep.subr.mxu0 0.0
    %379 = vmatpush1.msra.mxu0 0.0
    %380 = vmatprep.subr.mxu0 0.0
    %381 = vmatpush1.msra.mxu0 0.0
    %382 = vmatprep.subr.mxu0 0.0
    %383 = vmatpush1.msra.mxu0 0.0
    %384 = vmatprep.subr.mxu0 0.0
    %385 = vmatpush1.msra.mxu0 0.0
    %386 = vmatprep.subr.mxu0 0.0
    %387 = vmatpush1.msra.mxu0 0.0
    %388 = vmatprep.subr.mxu0 0.0
    %389 = vmatpush1.msra.mxu0 0.0
    %390 = vmatprep.mubr.f32.mxu0 0.0
    %391 = vmatmul.mubr.f32.gmra.mrb[0].mxu0 %v321
    %v392 = vpop.f32.mrb[0].mxu0
    %v393 = vadd.f32 0.0, %v392
    %v394 = vpop.f32.mrb[0].mxu0
    %395 = vmatprep.mubr.f32.mxu0 0.0
    %396 = vmatmul.mubr.f32.gmra.mrb[0].mxu0 %v324
    %v397 = vpop.f32.mrb[0].mxu0
    %v398 = vadd.f32 0.0, %v397
    %v399 = vpop.f32.mrb[0].mxu0
    %400 = vdwg.mxu0
    %vm401 = vcmask 523264
    %v403 = vsel %vm401, %v393, 0
    %v406 = vsel %vm401, %v398, 0
    %408 = vmatprep.subr.mxu0 %v73
    %409 = vmatpush1.msra.mxu0 %v72
    %410 = vmatprep.subr.mxu0 %v75
    %411 = vmatpush1.msra.mxu0 %v74
    %412 = vmatprep.subr.mxu0 %v77
    %413 = vmatpush1.msra.mxu0 %v76
    %414 = vmatprep.subr.mxu0 %v79
    %415 = vmatpush1.msra.mxu0 %v78
    %416 = vmatprep.subr.mxu0 %v81
    %417 = vmatpush1.msra.mxu0 %v80
    %418 = vmatprep.subr.mxu0 %v83
    %419 = vmatpush1.msra.mxu0 %v82
    %420 = vmatprep.subr.mxu0 %v85
    %421 = vmatpush1.msra.mxu0 %v84
    %422 = vmatprep.subr.mxu0 %v87
    %423 = vmatpush1.msra.mxu0 %v86
    %424 = vmatprep.subr.mxu0 0.0
    %425 = vmatpush1.msra.mxu0 0.0
    %426 = vmatprep.subr.mxu0 0.0
    %427 = vmatpush1.msra.mxu0 0.0
    %428 = vmatprep.subr.mxu0 0.0
    %429 = vmatpush1.msra.mxu0 0.0
    %430 = vmatprep.subr.mxu0 0.0
    %431 = vmatpush1.msra.mxu0 0.0
    %432 = vmatprep.subr.mxu0 0.0
    %433 = vmatpush1.msra.mxu0 0.0
    %434 = vmatprep.subr.mxu0 0.0
    %435 = vmatpush1.msra.mxu0 0.0
    %436 = vmatprep.subr.mxu0 0.0
    %437 = vmatpush1.msra.mxu0 0.0
    %438 = vmatprep.subr.mxu0 0.0
    %439 = vmatpush1.msra.mxu0 0.0
    %440 = vmatprep.subr.mxu0 0.0
    %441 = vmatpush1.msra.mxu0 0.0
    %442 = vmatprep.subr.mxu0 0.0
    %443 = vmatpush1.msra.mxu0 0.0
    %444 = vmatprep.subr.mxu0 0.0
    %445 = vmatpush1.msra.mxu0 0.0
    %446 = vmatprep.subr.mxu0 0.0
    %447 = vmatpush1.msra.mxu0 0.0
    %448 = vmatprep.subr.mxu0 0.0
    %449 = vmatpush1.msra.mxu0 0.0
    %450 = vmatprep.subr.mxu0 0.0
    %451 = vmatpush1.msra.mxu0 0.0
    %452 = vmatprep.subr.mxu0 0.0
    %453 = vmatpush1.msra.mxu0 0.0
    %454 = vmatprep.subr.mxu0 0.0
    %455 = vmatpush1.msra.mxu0 0.0
    %456 = vmatprep.subr.mxu0 0.0
    %457 = vmatpush1.msra.mxu0 0.0
    %458 = vmatprep.subr.mxu0 0.0
    %459 = vmatpush1.msra.mxu0 0.0
    %460 = vmatprep.subr.mxu0 0.0
    %461 = vmatpush1.msra.mxu0 0.0
    %462 = vmatprep.subr.mxu0 0.0
    %463 = vmatpush1.msra.mxu0 0.0
    %464 = vmatprep.subr.mxu0 0.0
    %465 = vmatpush1.msra.mxu0 0.0
    %466 = vmatprep.subr.mxu0 0.0
    %467 = vmatpush1.msra.mxu0 0.0
    %468 = vmatprep.subr.mxu0 0.0
    %469 = vmatpush1.msra.mxu0 0.0
    %470 = vmatprep.subr.mxu0 0.0
    %471 = vmatpush1.msra.mxu0 0.0
    %472 = vmatprep.mubr.f32.mxu0 0.0
    %473 = vmatmul.mubr.f32.gmra.mrb[0].mxu0 %v403
    %v474 = vpop.f32.mrb[0].mxu0
    %v475 = vadd.f32 0.0, %v474
    %v476 = vpop.f32.mrb[0].mxu0
    %v477 = vadd.f32 0.0, %v476
    %478 = vmatprep.mubr.f32.mxu0 0.0
    %479 = vmatmul.mubr.f32.gmra.mrb[0].mxu0 %v406
    %v480 = vpop.f32.mrb[0].mxu0
    %v481 = vadd.f32 0.0, %v480
    %v482 = vpop.f32.mrb[0].mxu0
    %v483 = vadd.f32 0.0, %v482
    %484 = vdwg.mxu0
    %v485 = vld [vmem:[%s5 + $0x2] sm:$0x1]
    %v486 = vld [vmem:[%s5 + $0x5] sm:$0x1]
    %v487 = vld [vmem:[#allocation2] sm:$0xff]
    %v488 = vld [vmem:[#allocation2 + $0x8] sm:$0xff]
    %v489 = vld [vmem:[#allocation2 + $0x10] sm:$0xff]
    %v490 = vld [vmem:[#allocation2 + $0x18] sm:$0xff]
    %v491 = vld [vmem:[#allocation2 + $0x20] sm:$0xff]
    %v492 = vld [vmem:[#allocation2 + $0x28] sm:$0xff]
    %v493 = vld [vmem:[#allocation2 + $0x30] sm:$0xff]
    %v494 = vld [vmem:[#allocation2 + $0x38] sm:$0xff]
    %s495 = scalar_lea.vmem [#allocation2], 64
    %v496 = vld [vmem:[%s495] sm:$0xff]
    %v497 = vld [vmem:[%s495 + $0x8] sm:$0xff]
    %v498 = vld [vmem:[%s495 + $0x10] sm:$0xff]
    %v499 = vld [vmem:[%s495 + $0x18] sm:$0xff]
    %v500 = vld [vmem:[%s495 + $0x20] sm:$0xff]
    %v501 = vld [vmem:[%s495 + $0x28] sm:$0xff]
    %v502 = vld [vmem:[%s495 + $0x30] sm:$0xff]
    %v503 = vld [vmem:[%s495 + $0x38] sm:$0xff]
    %s504 = scalar_lea.vmem [#allocation2], 128
    %v505 = vld [vmem:[%s504] sm:$0xff]
    %v506 = vld [vmem:[%s504 + $0x8] sm:$0xff]
    %v507 = vld [vmem:[%s504 + $0x10] sm:$0xff]
    %v508 = vld [vmem:[%s504 + $0x18] sm:$0xff]
    %v509 = vld [vmem:[%s504 + $0x20] sm:$0xff]
    %v510 = vld [vmem:[%s504 + $0x28] sm:$0xff]
    %v511 = vld [vmem:[%s504 + $0x30] sm:$0xff]
    %v512 = vld [vmem:[%s504 + $0x38] sm:$0xff]
    %v514 = vsel %vm300, %v296, 0
    %v517 = vsel %vm300, %v297, 0
    %519 = vmatprep.subr.mxu0 0.0
    %520 = vmatpush1.msra.mxu0 %v180
    %521 = vmatprep.subr.mxu0 0.0
    %522 = vmatpush1.msra.mxu0 %v181
    %523 = vmatprep.subr.mxu0 0.0
    %524 = vmatpush1.msra.mxu0 0.0
    %525 = vmatprep.subr.mxu0 0.0
    %526 = vmatpush1.msra.mxu0 0.0
    %527 = vmatprep.subr.mxu0 0.0
    %528 = vmatpush1.msra.mxu0 0.0
    %529 = vmatprep.subr.mxu0 0.0
    %530 = vmatpush1.msra.mxu0 0.0
    %531 = vmatprep.subr.mxu0 0.0
    %532 = vmatpush1.msra.mxu0 0.0
    %533 = vmatprep.subr.mxu0 0.0
    %534 = vmatpush1.msra.mxu0 0.0
    %535 = vmatprep.subr.mxu0 0.0
    %536 = vmatpush1.msra.mxu0 0.0
    %537 = vmatprep.subr.mxu0 0.0
    %538 = vmatpush1.msra.mxu0 0.0
    %539 = vmatprep.subr.mxu0 0.0
    %540 = vmatpush1.msra.mxu0 0.0
    %541 = vmatprep.subr.mxu0 0.0
    %542 = vmatpush1.msra.mxu0 0.0
    %543 = vmatprep.subr.mxu0 0.0
    %544 = vmatpush1.msra.mxu0 0.0
    %545 = vmatprep.subr.mxu0 0.0
    %546 = vmatpush1.msra.mxu0 0.0
    %547 = vmatprep.subr.mxu0 0.0
    %548 = vmatpush1.msra.mxu0 0.0
    %549 = vmatprep.subr.mxu0 0.0
    %550 = vmatpush1.msra.mxu0 0.0
    %551 = vmatprep.subr.mxu0 0.0
    %552 = vmatpush1.msra.mxu0 0.0
    %553 = vmatprep.subr.mxu0 0.0
    %554 = vmatpush1.msra.mxu0 0.0
    %555 = vmatprep.subr.mxu0 0.0
    %556 = vmatpush1.msra.mxu0 0.0
    %557 = vmatprep.subr.mxu0 0.0
    %558 = vmatpush1.msra.mxu0 0.0
    %559 = vmatprep.subr.mxu0 0.0
    %560 = vmatpush1.msra.mxu0 0.0
    %561 = vmatprep.subr.mxu0 0.0
    %562 = vmatpush1.msra.mxu0 0.0
    %563 = vmatprep.subr.mxu0 0.0
    %564 = vmatpush1.msra.mxu0 0.0
    %565 = vmatprep.subr.mxu0 0.0
    %566 = vmatpush1.msra.mxu0 0.0
    %567 = vmatprep.subr.mxu0 0.0
    %568 = vmatpush1.msra.mxu0 0.0
    %569 = vmatprep.subr.mxu0 0.0
    %570 = vmatpush1.msra.mxu0 0.0
    %571 = vmatprep.subr.mxu0 0.0
    %572 = vmatpush1.msra.mxu0 0.0
    %573 = vmatprep.subr.mxu0 0.0
    %574 = vmatpush1.msra.mxu0 0.0
    %575 = vmatprep.subr.mxu0 0.0
    %576 = vmatpush1.msra.mxu0 0.0
    %577 = vmatprep.subr.mxu0 0.0
    %578 = vmatpush1.msra.mxu0 0.0
    %579 = vmatprep.subr.mxu0 0.0
    %580 = vmatpush1.msra.mxu0 0.0
    %581 = vmatprep.subr.mxu0 0.0
    %582 = vmatpush1.msra.mxu0 0.0
    %583 = vmatprep.mubr.f32.mxu0 0.0
    %584 = vmatmul.mubr.f32.gmra.mrb[0].mxu0 %v514
    %v585 = vpop.f32.mrb[0].mxu0
    %v586 = vadd.f32 0.0, %v585
    %v587 = vpop.f32.mrb[0].mxu0
    %588 = vmatprep.mubr.f32.mxu0 0.0
    %589 = vmatmul.mubr.f32.gmra.mrb[0].mxu0 %v517
    %v590 = vpop.f32.mrb[0].mxu0
    %v591 = vadd.f32 0.0, %v590
    %v592 = vpop.f32.mrb[0].mxu0
    %593 = vdwg.mxu0
    %v595 = vsel %vm401, %v586, 0
    %v598 = vsel %vm401, %v591, 0
    %600 = vmatprep.subr.mxu0 0.0
    %601 = vmatpush1.msra.mxu0 %v487
    %602 = vmatprep.subr.mxu0 0.0
    %603 = vmatpush1.msra.mxu0 %v488
    %604 = vmatprep.subr.mxu0 0.0
    %605 = vmatpush1.msra.mxu0 %v489
    %606 = vmatprep.subr.mxu0 0.0
    %607 = vmatpush1.msra.mxu0 %v490
    %608 = vmatprep.subr.mxu0 0.0
    %609 = vmatpush1.msra.mxu0 %v491
    %610 = vmatprep.subr.mxu0 0.0
    %611 = vmatpush1.msra.mxu0 %v492
    %612 = vmatprep.subr.mxu0 0.0
    %613 = vmatpush1.msra.mxu0 %v493
    %614 = vmatprep.subr.mxu0 0.0
    %615 = vmatpush1.msra.mxu0 %v494
    %616 = vmatprep.subr.mxu0 0.0
    %617 = vmatpush1.msra.mxu0 0.0
    %618 = vmatprep.subr.mxu0 0.0
    %619 = vmatpush1.msra.mxu0 0.0
    %620 = vmatprep.subr.mxu0 0.0
    %621 = vmatpush1.msra.mxu0 0.0
    %622 = vmatprep.subr.mxu0 0.0
    %623 = vmatpush1.msra.mxu0 0.0
    %624 = vmatprep.subr.mxu0 0.0
    %625 = vmatpush1.msra.mxu0 0.0
    %626 = vmatprep.subr.mxu0 0.0
    %627 = vmatpush1.msra.mxu0 0.0
    %628 = vmatprep.subr.mxu0 0.0
    %629 = vmatpush1.msra.mxu0 0.0
    %630 = vmatprep.subr.mxu0 0.0
    %631 = vmatpush1.msra.mxu0 0.0
    %632 = vmatprep.subr.mxu0 0.0
    %633 = vmatpush1.msra.mxu0 0.0
    %634 = vmatprep.subr.mxu0 0.0
    %635 = vmatpush1.msra.mxu0 0.0
    %636 = vmatprep.subr.mxu0 0.0
    %637 = vmatpush1.msra.mxu0 0.0
    %638 = vmatprep.subr.mxu0 0.0
    %639 = vmatpush1.msra.mxu0 0.0
    %640 = vmatprep.subr.mxu0 0.0
    %641 = vmatpush1.msra.mxu0 0.0
    %642 = vmatprep.subr.mxu0 0.0
    %643 = vmatpush1.msra.mxu0 0.0
    %644 = vmatprep.subr.mxu0 0.0
    %645 = vmatpush1.msra.mxu0 0.0
    %646 = vmatprep.subr.mxu0 0.0
    %647 = vmatpush1.msra.mxu0 0.0
    %648 = vmatprep.subr.mxu0 0.0
    %649 = vmatpush1.msra.mxu0 0.0
    %650 = vmatprep.subr.mxu0 0.0
    %651 = vmatpush1.msra.mxu0 0.0
    %652 = vmatprep.subr.mxu0 0.0
    %653 = vmatpush1.msra.mxu0 0.0
    %654 = vmatprep.subr.mxu0 0.0
    %655 = vmatpush1.msra.mxu0 0.0
    %656 = vmatprep.subr.mxu0 0.0
    %657 = vmatpush1.msra.mxu0 0.0
    %658 = vmatprep.subr.mxu0 0.0
    %659 = vmatpush1.msra.mxu0 0.0
    %660 = vmatprep.subr.mxu0 0.0
    %661 = vmatpush1.msra.mxu0 0.0
    %662 = vmatprep.subr.mxu0 0.0
    %663 = vmatpush1.msra.mxu0 0.0
    %664 = vmatprep.mubr.f32.mxu0 0.0
    %665 = vmatmul.mubr.f32.gmra.mrb[0].mxu0 %v595
    %v666 = vpop.f32.mrb[0].mxu0
    %v667 = vadd.f32 %v475, %v666
    %v668 = vpop.f32.mrb[0].mxu0
    %669 = vmatprep.mubr.f32.mxu0 0.0
    %670 = vmatmul.mubr.f32.gmra.mrb[0].mxu0 %v598
    %v671 = vpop.f32.mrb[0].mxu0
    %v672 = vadd.f32 %v481, %v671
    %v673 = vpop.f32.mrb[0].mxu0
    %674 = vdwg.mxu0
    %v675 = vmul.f32 %v310, %v667
    %v676 = vmul.f32 %v312, %v672
    %v677 = vlaneseq
    %v678 = vshrl.u32 %v677, 7
    %v679 = vsub.s32 0, %v678
    %v680 = vrot.slane %v485, %v679
    %v681 = vmul.f32 %v317, %v680
    %v682 = vmul.f32 %v318, %v680
    %v683 = vadd.f32 %v675, %v681
    %v684 = vadd.f32 %v676, %v682
    %v686 = vsel %vm401, %v683, 0
    %v689 = vsel %vm401, %v684, 0
    %691 = vmatprep.subr.mxu0 0.0
    %692 = vmatpush1.msra.mxu0 %v505
    %693 = vmatprep.subr.mxu0 0.0
    %694 = vmatpush1.msra.mxu0 %v506
    %695 = vmatprep.subr.mxu0 0.0
    %696 = vmatpush1.msra.mxu0 %v507
    %697 = vmatprep.subr.mxu0 0.0
    %698 = vmatpush1.msra.mxu0 %v508
    %699 = vmatprep.subr.mxu0 0.0
    %700 = vmatpush1.msra.mxu0 %v509
    %701 = vmatprep.subr.mxu0 0.0
    %702 = vmatpush1.msra.mxu0 %v510
    %703 = vmatprep.subr.mxu0 0.0
    %704 = vmatpush1.msra.mxu0 %v511
    %705 = vmatprep.subr.mxu0 0.0
    %706 = vmatpush1.msra.mxu0 %v512
    %707 = vmatprep.subr.mxu0 0.0
    %708 = vmatpush1.msra.mxu0 0.0
    %709 = vmatprep.subr.mxu0 0.0
    %710 = vmatpush1.msra.mxu0 0.0
    %711 = vmatprep.subr.mxu0 0.0
    %712 = vmatpush1.msra.mxu0 0.0
    %713 = vmatprep.subr.mxu0 0.0
    %714 = vmatpush1.msra.mxu0 0.0
    %715 = vmatprep.subr.mxu0 0.0
    %716 = vmatpush1.msra.mxu0 0.0
    %717 = vmatprep.subr.mxu0 0.0
    %718 = vmatpush1.msra.mxu0 0.0
    %719 = vmatprep.subr.mxu0 0.0
    %720 = vmatpush1.msra.mxu0 0.0
    %721 = vmatprep.subr.mxu0 0.0
    %722 = vmatpush1.msra.mxu0 0.0
    %723 = vmatprep.subr.mxu0 0.0
    %724 = vmatpush1.msra.mxu0 0.0
    %725 = vmatprep.subr.mxu0 0.0
    %726 = vmatpush1.msra.mxu0 0.0
    %727 = vmatprep.subr.mxu0 0.0
    %728 = vmatpush1.msra.mxu0 0.0
    %729 = vmatprep.subr.mxu0 0.0
    %730 = vmatpush1.msra.mxu0 0.0
    %731 = vmatprep.subr.mxu0 0.0
    %732 = vmatpush1.msra.mxu0 0.0
    %733 = vmatprep.subr.mxu0 0.0
    %734 = vmatpush1.msra.mxu0 0.0
    %735 = vmatprep.subr.mxu0 0.0
    %736 = vmatpush1.msra.mxu0 0.0
    %737 = vmatprep.subr.mxu0 0.0
    %738 = vmatpush1.msra.mxu0 0.0
    %739 = vmatprep.subr.mxu0 0.0
    %740 = vmatpush1.msra.mxu0 0.0
    %741 = vmatprep.subr.mxu0 0.0
    %742 = vmatpush1.msra.mxu0 0.0
    %743 = vmatprep.subr.mxu0 0.0
    %744 = vmatpush1.msra.mxu0 0.0
    %745 = vmatprep.subr.mxu0 0.0
    %746 = vmatpush1.msra.mxu0 0.0
    %747 = vmatprep.subr.mxu0 0.0
    %748 = vmatpush1.msra.mxu0 0.0
    %749 = vmatprep.subr.mxu0 0.0
    %750 = vmatpush1.msra.mxu0 0.0
    %751 = vmatprep.subr.mxu0 0.0
    %752 = vmatpush1.msra.mxu0 0.0
    %753 = vmatprep.subr.mxu0 0.0
    %754 = vmatpush1.msra.mxu0 0.0
    %755 = vmatprep.mubr.f32.mxu0 0.0
    %756 = vmatmul.mubr.f32.gmra.mrb[0].mxu0 %v686
    %v757 = vpop.f32.mrb[0].mxu0
    %v758 = vadd.f32 0.0, %v757
    %v759 = vpop.f32.mrb[0].mxu0
    %760 = vmatprep.mubr.f32.mxu0 0.0
    %761 = vmatmul.mubr.f32.gmra.mrb[0].mxu0 %v689
    %v762 = vpop.f32.mrb[0].mxu0
    %v763 = vadd.f32 0.0, %v762
    %v764 = vpop.f32.mrb[0].mxu0
    %765 = vdwg.mxu0
    %v767 = vsel %vm401, %v180, 0
    %v770 = vsel %vm401, %v181, 0
    %772 = vmatprep.subr.mxu0 0.0
    %773 = vmatpush1.msra.mxu0 %v496
    %774 = vmatprep.subr.mxu0 0.0
    %775 = vmatpush1.msra.mxu0 %v497
    %776 = vmatprep.subr.mxu0 0.0
    %777 = vmatpush1.msra.mxu0 %v498
    %778 = vmatprep.subr.mxu0 0.0
    %779 = vmatpush1.msra.mxu0 %v499
    %780 = vmatprep.subr.mxu0 0.0
    %781 = vmatpush1.msra.mxu0 %v500
    %782 = vmatprep.subr.mxu0 0.0
    %783 = vmatpush1.msra.mxu0 %v501
    %784 = vmatprep.subr.mxu0 0.0
    %785 = vmatpush1.msra.mxu0 %v502
    %786 = vmatprep.subr.mxu0 0.0
    %787 = vmatpush1.msra.mxu0 %v503
    %788 = vmatprep.subr.mxu0 0.0
    %789 = vmatpush1.msra.mxu0 0.0
    %790 = vmatprep.subr.mxu0 0.0
    %791 = vmatpush1.msra.mxu0 0.0
    %792 = vmatprep.subr.mxu0 0.0
    %793 = vmatpush1.msra.mxu0 0.0
    %794 = vmatprep.subr.mxu0 0.0
    %795 = vmatpush1.msra.mxu0 0.0
    %796 = vmatprep.subr.mxu0 0.0
    %797 = vmatpush1.msra.mxu0 0.0
    %798 = vmatprep.subr.mxu0 0.0
    %799 = vmatpush1.msra.mxu0 0.0
    %800 = vmatprep.subr.mxu0 0.0
    %801 = vmatpush1.msra.mxu0 0.0
    %802 = vmatprep.subr.mxu0 0.0
    %803 = vmatpush1.msra.mxu0 0.0
    %804 = vmatprep.subr.mxu0 0.0
    %805 = vmatpush1.msra.mxu0 0.0
    %806 = vmatprep.subr.mxu0 0.0
    %807 = vmatpush1.msra.mxu0 0.0
    %808 = vmatprep.subr.mxu0 0.0
    %809 = vmatpush1.msra.mxu0 0.0
    %810 = vmatprep.subr.mxu0 0.0
    %811 = vmatpush1.msra.mxu0 0.0
    %812 = vmatprep.subr.mxu0 0.0
    %813 = vmatpush1.msra.mxu0 0.0
    %814 = vmatprep.subr.mxu0 0.0
    %815 = vmatpush1.msra.mxu0 0.0
    %816 = vmatprep.subr.mxu0 0.0
    %817 = vmatpush1.msra.mxu0 0.0
    %818 = vmatprep.subr.mxu0 0.0
    %819 = vmatpush1.msra.mxu0 0.0
    %820 = vmatprep.subr.mxu0 0.0
    %821 = vmatpush1.msra.mxu0 0.0
    %822 = vmatprep.subr.mxu0 0.0
    %823 = vmatpush1.msra.mxu0 0.0
    %824 = vmatprep.subr.mxu0 0.0
    %825 = vmatpush1.msra.mxu0 0.0
    %826 = vmatprep.subr.mxu0 0.0
    %827 = vmatpush1.msra.mxu0 0.0
    %828 = vmatprep.subr.mxu0 0.0
    %829 = vmatpush1.msra.mxu0 0.0
    %830 = vmatprep.subr.mxu0 0.0
    %831 = vmatpush1.msra.mxu0 0.0
    %832 = vmatprep.subr.mxu0 0.0
    %833 = vmatpush1.msra.mxu0 0.0
    %834 = vmatprep.subr.mxu0 0.0
    %835 = vmatpush1.msra.mxu0 0.0
    %836 = vmatprep.mubr.f32.mxu0 0.0
    %837 = vmatmul.mubr.f32.gmra.mrb[0].mxu0 %v767
    %v838 = vpop.f32.mrb[0].mxu0
    %v839 = vadd.f32 %v758, %v838
    %v840 = vpop.f32.mrb[0].mxu0
    %841 = vmatprep.mubr.f32.mxu0 0.0
    %842 = vmatmul.mubr.f32.gmra.mrb[0].mxu0 %v770
    %v843 = vpop.f32.mrb[0].mxu0
    %v844 = vadd.f32 %v763, %v843
    %v845 = vpop.f32.mrb[0].mxu0
    %846 = vdwg.mxu0
    %v847 = vlaneseq
    %v848 = vshrl.u32 %v847, 7
    %v849 = vsub.s32 0, %v848
    %v850 = vrot.slane %v486, %v849
    %v851 = vadd.f32 %v839, %v850
    %v852 = vadd.f32 %v844, %v850
    %v853 = vmax.f32 %v851, 0.0
    %v854 = vmax.f32 %v852, 0.0
    %v855 = vld [vmem:[%s5 + $0x3] sm:$0x1]
    %v856 = vld [vmem:[%s5 + $0x6] sm:$0x1]
    %s857 = scalar_lea.vmem [#allocation2], 192
    %v858 = vld [vmem:[%s857] sm:$0xff]
    %v859 = vld [vmem:[%s857 + $0x8] sm:$0xff]
    %v860 = vld [vmem:[%s857 + $0x10] sm:$0xff]
    %v861 = vld [vmem:[%s857 + $0x18] sm:$0xff]
    %v862 = vld [vmem:[%s857 + $0x20] sm:$0xff]
    %v863 = vld [vmem:[%s857 + $0x28] sm:$0xff]
    %v864 = vld [vmem:[%s857 + $0x30] sm:$0xff]
    %v865 = vld [vmem:[%s857 + $0x38] sm:$0xff]
    %s866 = scalar_lea.vmem [#allocation2], 256
    %v867 = vld [vmem:[%s866] sm:$0xff]
    %v868 = vld [vmem:[%s866 + $0x8] sm:$0xff]
    %v869 = vld [vmem:[%s866 + $0x10] sm:$0xff]
    %v870 = vld [vmem:[%s866 + $0x18] sm:$0xff]
    %v871 = vld [vmem:[%s866 + $0x20] sm:$0xff]
    %v872 = vld [vmem:[%s866 + $0x28] sm:$0xff]
    %v873 = vld [vmem:[%s866 + $0x30] sm:$0xff]
    %v874 = vld [vmem:[%s866 + $0x38] sm:$0xff]
    %s875 = scalar_lea.vmem [#allocation2], 320
    %v876 = vld [vmem:[%s875] sm:$0xff]
    %v877 = vld [vmem:[%s875 + $0x8] sm:$0xff]
    %v878 = vld [vmem:[%s875 + $0x10] sm:$0xff]
    %v879 = vld [vmem:[%s875 + $0x18] sm:$0xff]
    %v880 = vld [vmem:[%s875 + $0x20] sm:$0xff]
    %v881 = vld [vmem:[%s875 + $0x28] sm:$0xff]
    %v882 = vld [vmem:[%s875 + $0x30] sm:$0xff]
    %v883 = vld [vmem:[%s875 + $0x38] sm:$0xff]
    %884 = vmatprep.subr.mxu0 0.0
    %885 = vmatpush1.msra.mxu0 %v853
    %886 = vmatprep.subr.mxu0 0.0
    %887 = vmatpush1.msra.mxu0 %v854
    %888 = vmatprep.subr.mxu0 0.0
    %889 = vmatpush1.msra.mxu0 0.0
    %890 = vmatprep.subr.mxu0 0.0
    %891 = vmatpush1.msra.mxu0 0.0
    %892 = vmatprep.subr.mxu0 0.0
    %893 = vmatpush1.msra.mxu0 0.0
    %894 = vmatprep.subr.mxu0 0.0
    %895 = vmatpush1.msra.mxu0 0.0
    %896 = vmatprep.subr.mxu0 0.0
    %897 = vmatpush1.msra.mxu0 0.0
    %898 = vmatprep.subr.mxu0 0.0
    %899 = vmatpush1.msra.mxu0 0.0
    %900 = vmatprep.subr.mxu0 0.0
    %901 = vmatpush1.msra.mxu0 0.0
    %902 = vmatprep.subr.mxu0 0.0
    %903 = vmatpush1.msra.mxu0 0.0
    %904 = vmatprep.subr.mxu0 0.0
    %905 = vmatpush1.msra.mxu0 0.0
    %906 = vmatprep.subr.mxu0 0.0
    %907 = vmatpush1.msra.mxu0 0.0
    %908 = vmatprep.subr.mxu0 0.0
    %909 = vmatpush1.msra.mxu0 0.0
    %910 = vmatprep.subr.mxu0 0.0
    %911 = vmatpush1.msra.mxu0 0.0
    %912 = vmatprep.subr.mxu0 0.0
    %913 = vmatpush1.msra.mxu0 0.0
    %914 = vmatprep.subr.mxu0 0.0
    %915 = vmatpush1.msra.mxu0 0.0
    %916 = vmatprep.subr.mxu0 0.0
    %917 = vmatpush1.msra.mxu0 0.0
    %918 = vmatprep.subr.mxu0 0.0
    %919 = vmatpush1.msra.mxu0 0.0
    %920 = vmatprep.subr.mxu0 0.0
    %921 = vmatpush1.msra.mxu0 0.0
    %922 = vmatprep.subr.mxu0 0.0
    %923 = vmatpush1.msra.mxu0 0.0
    %924 = vmatprep.subr.mxu0 0.0
    %925 = vmatpush1.msra.mxu0 0.0
    %926 = vmatprep.subr.mxu0 0.0
    %927 = vmatpush1.msra.mxu0 0.0
    %928 = vmatprep.subr.mxu0 0.0
    %929 = vmatpush1.msra.mxu0 0.0
    %930 = vmatprep.subr.mxu0 0.0
    %931 = vmatpush1.msra.mxu0 0.0
    %932 = vmatprep.subr.mxu0 0.0
    %933 = vmatpush1.msra.mxu0 0.0
    %934 = vmatprep.subr.mxu0 0.0
    %935 = vmatpush1.msra.mxu0 0.0
    %936 = vmatprep.subr.mxu0 0.0
    %937 = vmatpush1.msra.mxu0 0.0
    %938 = vmatprep.subr.mxu0 0.0
    %939 = vmatpush1.msra.mxu0 0.0
    %940 = vmatprep.subr.mxu0 0.0
    %941 = vmatpush1.msra.mxu0 0.0
    %942 = vmatprep.subr.mxu0 0.0
    %943 = vmatpush1.msra.mxu0 0.0
    %944 = vmatprep.subr.mxu0 0.0
    %945 = vmatpush1.msra.mxu0 0.0
    %946 = vmatprep.subr.mxu0 0.0
    %947 = vmatpush1.msra.mxu0 0.0
    %948 = vmatprep.mubr.f32.mxu0 0.0
    %949 = vmatmul.mubr.f32.gmra.mrb[0].mxu0 %v514
    %v950 = vpop.f32.mrb[0].mxu0
    %v951 = vadd.f32 0.0, %v950
    %v952 = vpop.f32.mrb[0].mxu0
    %953 = vmatprep.mubr.f32.mxu0 0.0
    %954 = vmatmul.mubr.f32.gmra.mrb[0].mxu0 %v517
    %v955 = vpop.f32.mrb[0].mxu0
    %v956 = vadd.f32 0.0, %v955
    %v957 = vpop.f32.mrb[0].mxu0
    %958 = vdwg.mxu0
    %961 = vrot.lane.b32.xlu0 %v475, 64
    %v962 = vpop.permute.xlu0 %961
    %963 = vrot.lane.b32.xlu0 %v481, 64
    %v964 = vpop.permute.xlu0 %963
    %v968 = vsel %vm401, %v951, 0
    %v971 = vsel %vm401, %v956, 0
    %973 = vmatprep.subr.mxu0 0.0
    %974 = vmatpush1.msra.mxu0 %v858
    %975 = vmatprep.subr.mxu0 0.0
    %976 = vmatpush1.msra.mxu0 %v859
    %977 = vmatprep.subr.mxu0 0.0
    %978 = vmatpush1.msra.mxu0 %v860
    %979 = vmatprep.subr.mxu0 0.0
    %980 = vmatpush1.msra.mxu0 %v861
    %981 = vmatprep.subr.mxu0 0.0
    %982 = vmatpush1.msra.mxu0 %v862
    %983 = vmatprep.subr.mxu0 0.0
    %984 = vmatpush1.msra.mxu0 %v863
    %985 = vmatprep.subr.mxu0 0.0
    %986 = vmatpush1.msra.mxu0 %v864
    %987 = vmatprep.subr.mxu0 0.0
    %988 = vmatpush1.msra.mxu0 %v865
    %989 = vmatprep.subr.mxu0 0.0
    %990 = vmatpush1.msra.mxu0 0.0
    %991 = vmatprep.subr.mxu0 0.0
    %992 = vmatpush1.msra.mxu0 0.0
    %993 = vmatprep.subr.mxu0 0.0
    %994 = vmatpush1.msra.mxu0 0.0
    %995 = vmatprep.subr.mxu0 0.0
    %996 = vmatpush1.msra.mxu0 0.0
    %997 = vmatprep.subr.mxu0 0.0
    %998 = vmatpush1.msra.mxu0 0.0
    %999 = vmatprep.subr.mxu0 0.0
    %1000 = vmatpush1.msra.mxu0 0.0
    %1001 = vmatprep.subr.mxu0 0.0
    %1002 = vmatpush1.msra.mxu0 0.0
    %1003 = vmatprep.subr.mxu0 0.0
    %1004 = vmatpush1.msra.mxu0 0.0
    %1005 = vmatprep.subr.mxu0 0.0
    %1006 = vmatpush1.msra.mxu0 0.0
    %1007 = vmatprep.subr.mxu0 0.0
    %1008 = vmatpush1.msra.mxu0 0.0
    %1009 = vmatprep.subr.mxu0 0.0
    %1010 = vmatpush1.msra.mxu0 0.0
    %1011 = vmatprep.subr.mxu0 0.0
    %1012 = vmatpush1.msra.mxu0 0.0
    %1013 = vmatprep.subr.mxu0 0.0
    %1014 = vmatpush1.msra.mxu0 0.0
    %1015 = vmatprep.subr.mxu0 0.0
    %1016 = vmatpush1.msra.mxu0 0.0
    %1017 = vmatprep.subr.mxu0 0.0
    %1018 = vmatpush1.msra.mxu0 0.0
    %1019 = vmatprep.subr.mxu0 0.0
    %1020 = vmatpush1.msra.mxu0 0.0
    %1021 = vmatprep.subr.mxu0 0.0
    %1022 = vmatpush1.msra.mxu0 0.0
    %1023 = vmatprep.subr.mxu0 0.0
    %1024 = vmatpush1.msra.mxu0 0.0
    %1025 = vmatprep.subr.mxu0 0.0
    %1026 = vmatpush1.msra.mxu0 0.0
    %1027 = vmatprep.subr.mxu0 0.0
    %1028 = vmatpush1.msra.mxu0 0.0
    %1029 = vmatprep.subr.mxu0 0.0
    %1030 = vmatpush1.msra.mxu0 0.0
    %1031 = vmatprep.subr.mxu0 0.0
    %1032 = vmatpush1.msra.mxu0 0.0
    %1033 = vmatprep.subr.mxu0 0.0
    %1034 = vmatpush1.msra.mxu0 0.0
    %1035 = vmatprep.subr.mxu0 0.0
    %1036 = vmatpush1.msra.mxu0 0.0
    %1037 = vmatprep.mubr.f32.mxu0 0.0
    %1038 = vmatmul.mubr.f32.gmra.mrb[0].mxu0 %v968
    %v1039 = vpop.f32.mrb[0].mxu0
    %v1040 = vadd.f32 %v962, %v1039
    %v1041 = vpop.f32.mrb[0].mxu0
    %1042 = vmatprep.mubr.f32.mxu0 0.0
    %1043 = vmatmul.mubr.f32.gmra.mrb[0].mxu0 %v971
    %v1044 = vpop.f32.mrb[0].mxu0
    %v1045 = vadd.f32 %v964, %v1044
    %v1046 = vpop.f32.mrb[0].mxu0
    %1047 = vdwg.mxu0
    %v1048 = vmul.f32 %v310, %v1040
    %v1049 = vmul.f32 %v312, %v1045
    %v1050 = vlaneseq
    %v1051 = vshrl.u32 %v1050, 7
    %v1052 = vsub.s32 0, %v1051
    %v1053 = vrot.slane %v855, %v1052
    %v1054 = vmul.f32 %v317, %v1053
    %v1055 = vmul.f32 %v318, %v1053
    %v1056 = vadd.f32 %v1048, %v1054
    %v1057 = vadd.f32 %v1049, %v1055
    %v1059 = vsel %vm401, %v1056, 0
    %v1062 = vsel %vm401, %v1057, 0
    %1064 = vmatprep.subr.mxu0 0.0
    %1065 = vmatpush1.msra.mxu0 %v876
    %1066 = vmatprep.subr.mxu0 0.0
    %1067 = vmatpush1.msra.mxu0 %v877
    %1068 = vmatprep.subr.mxu0 0.0
    %1069 = vmatpush1.msra.mxu0 %v878
    %1070 = vmatprep.subr.mxu0 0.0
    %1071 = vmatpush1.msra.mxu0 %v879
    %1072 = vmatprep.subr.mxu0 0.0
    %1073 = vmatpush1.msra.mxu0 %v880
    %1074 = vmatprep.subr.mxu0 0.0
    %1075 = vmatpush1.msra.mxu0 %v881
    %1076 = vmatprep.subr.mxu0 0.0
    %1077 = vmatpush1.msra.mxu0 %v882
    %1078 = vmatprep.subr.mxu0 0.0
    %1079 = vmatpush1.msra.mxu0 %v883
    %1080 = vmatprep.subr.mxu0 0.0
    %1081 = vmatpush1.msra.mxu0 0.0
    %1082 = vmatprep.subr.mxu0 0.0
    %1083 = vmatpush1.msra.mxu0 0.0
    %1084 = vmatprep.subr.mxu0 0.0
    %1085 = vmatpush1.msra.mxu0 0.0
    %1086 = vmatprep.subr.mxu0 0.0
    %1087 = vmatpush1.msra.mxu0 0.0
    %1088 = vmatprep.subr.mxu0 0.0
    %1089 = vmatpush1.msra.mxu0 0.0
    %1090 = vmatprep.subr.mxu0 0.0
    %1091 = vmatpush1.msra.mxu0 0.0
    %1092 = vmatprep.subr.mxu0 0.0
    %1093 = vmatpush1.msra.mxu0 0.0
    %1094 = vmatprep.subr.mxu0 0.0
    %1095 = vmatpush1.msra.mxu0 0.0
    %1096 = vmatprep.subr.mxu0 0.0
    %1097 = vmatpush1.msra.mxu0 0.0
    %1098 = vmatprep.subr.mxu0 0.0
    %1099 = vmatpush1.msra.mxu0 0.0
    %1100 = vmatprep.subr.mxu0 0.0
    %1101 = vmatpush1.msra.mxu0 0.0
    %1102 = vmatprep.subr.mxu0 0.0
    %1103 = vmatpush1.msra.mxu0 0.0
    %1104 = vmatprep.subr.mxu0 0.0
    %1105 = vmatpush1.msra.mxu0 0.0
    %1106 = vmatprep.subr.mxu0 0.0
    %1107 = vmatpush1.msra.mxu0 0.0
    %1108 = vmatprep.subr.mxu0 0.0
    %1109 = vmatpush1.msra.mxu0 0.0
    %1110 = vmatprep.subr.mxu0 0.0
    %1111 = vmatpush1.msra.mxu0 0.0
    %1112 = vmatprep.subr.mxu0 0.0
    %1113 = vmatpush1.msra.mxu0 0.0
    %1114 = vmatprep.subr.mxu0 0.0
    %1115 = vmatpush1.msra.mxu0 0.0
    %1116 = vmatprep.subr.mxu0 0.0
    %1117 = vmatpush1.msra.mxu0 0.0
    %1118 = vmatprep.subr.mxu0 0.0
    %1119 = vmatpush1.msra.mxu0 0.0
    %1120 = vmatprep.subr.mxu0 0.0
    %1121 = vmatpush1.msra.mxu0 0.0
    %1122 = vmatprep.subr.mxu0 0.0
    %1123 = vmatpush1.msra.mxu0 0.0
    %1124 = vmatprep.subr.mxu0 0.0
    %1125 = vmatpush1.msra.mxu0 0.0
    %1126 = vmatprep.subr.mxu0 0.0
    %1127 = vmatpush1.msra.mxu0 0.0
    %1128 = vmatprep.mubr.f32.mxu0 0.0
    %1129 = vmatmul.mubr.f32.gmra.mrb[0].mxu0 %v1059
    %v1130 = vpop.f32.mrb[0].mxu0
    %v1131 = vadd.f32 0.0, %v1130
    %v1132 = vpop.f32.mrb[0].mxu0
    %1133 = vmatprep.mubr.f32.mxu0 0.0
    %1134 = vmatmul.mubr.f32.gmra.mrb[0].mxu0 %v1062
    %v1135 = vpop.f32.mrb[0].mxu0
    %v1136 = vadd.f32 0.0, %v1135
    %v1137 = vpop.f32.mrb[0].mxu0
    %1138 = vdwg.mxu0
    %v1140 = vsel %vm401, %v853, 0
    %v1143 = vsel %vm401, %v854, 0
    %1145 = vmatprep.subr.mxu0 0.0
    %1146 = vmatpush1.msra.mxu0 %v867
    %1147 = vmatprep.subr.mxu0 0.0
    %1148 = vmatpush1.msra.mxu0 %v868
    %1149 = vmatprep.subr.mxu0 0.0
    %1150 = vmatpush1.msra.mxu0 %v869
    %1151 = vmatprep.subr.mxu0 0.0
    %1152 = vmatpush1.msra.mxu0 %v870
    %1153 = vmatprep.subr.mxu0 0.0
    %1154 = vmatpush1.msra.mxu0 %v871
    %1155 = vmatprep.subr.mxu0 0.0
    %1156 = vmatpush1.msra.mxu0 %v872
    %1157 = vmatprep.subr.mxu0 0.0
    %1158 = vmatpush1.msra.mxu0 %v873
    %1159 = vmatprep.subr.mxu0 0.0
    %1160 = vmatpush1.msra.mxu0 %v874
    %1161 = vmatprep.subr.mxu0 0.0
    %1162 = vmatpush1.msra.mxu0 0.0
    %1163 = vmatprep.subr.mxu0 0.0
    %1164 = vmatpush1.msra.mxu0 0.0
    %1165 = vmatprep.subr.mxu0 0.0
    %1166 = vmatpush1.msra.mxu0 0.0
    %1167 = vmatprep.subr.mxu0 0.0
    %1168 = vmatpush1.msra.mxu0 0.0
    %1169 = vmatprep.subr.mxu0 0.0
    %1170 = vmatpush1.msra.mxu0 0.0
    %1171 = vmatprep.subr.mxu0 0.0
    %1172 = vmatpush1.msra.mxu0 0.0
    %1173 = vmatprep.subr.mxu0 0.0
    %1174 = vmatpush1.msra.mxu0 0.0
    %1175 = vmatprep.subr.mxu0 0.0
    %1176 = vmatpush1.msra.mxu0 0.0
    %1177 = vmatprep.subr.mxu0 0.0
    %1178 = vmatpush1.msra.mxu0 0.0
    %1179 = vmatprep.subr.mxu0 0.0
    %1180 = vmatpush1.msra.mxu0 0.0
    %1181 = vmatprep.subr.mxu0 0.0
    %1182 = vmatpush1.msra.mxu0 0.0
    %1183 = vmatprep.subr.mxu0 0.0
    %1184 = vmatpush1.msra.mxu0 0.0
    %1185 = vmatprep.subr.mxu0 0.0
    %1186 = vmatpush1.msra.mxu0 0.0
    %1187 = vmatprep.subr.mxu0 0.0
    %1188 = vmatpush1.msra.mxu0 0.0
    %1189 = vmatprep.subr.mxu0 0.0
    %1190 = vmatpush1.msra.mxu0 0.0
    %1191 = vmatprep.subr.mxu0 0.0
    %1192 = vmatpush1.msra.mxu0 0.0
    %1193 = vmatprep.subr.mxu0 0.0
    %1194 = vmatpush1.msra.mxu0 0.0
    %1195 = vmatprep.subr.mxu0 0.0
    %1196 = vmatpush1.msra.mxu0 0.0
    %1197 = vmatprep.subr.mxu0 0.0
    %1198 = vmatpush1.msra.mxu0 0.0
    %1199 = vmatprep.subr.mxu0 0.0
    %1200 = vmatpush1.msra.mxu0 0.0
    %1201 = vmatprep.subr.mxu0 0.0
    %1202 = vmatpush1.msra.mxu0 0.0
    %1203 = vmatprep.subr.mxu0 0.0
    %1204 = vmatpush1.msra.mxu0 0.0
    %1205 = vmatprep.subr.mxu0 0.0
    %1206 = vmatpush1.msra.mxu0 0.0
    %1207 = vmatprep.subr.mxu0 0.0
    %1208 = vmatpush1.msra.mxu0 0.0
    %1209 = vmatprep.mubr.f32.mxu0 0.0
    %1210 = vmatmul.mubr.f32.gmra.mrb[0].mxu0 %v1140
    %v1211 = vpop.f32.mrb[0].mxu0
    %v1212 = vadd.f32 %v1131, %v1211
    %v1213 = vpop.f32.mrb[0].mxu0
    %1214 = vmatprep.mubr.f32.mxu0 0.0
    %1215 = vmatmul.mubr.f32.gmra.mrb[0].mxu0 %v1143
    %v1216 = vpop.f32.mrb[0].mxu0
    %v1217 = vadd.f32 %v1136, %v1216
    %v1218 = vpop.f32.mrb[0].mxu0
    %1219 = vdwg.mxu0
    %v1220 = vlaneseq
    %v1221 = vshrl.u32 %v1220, 7
    %v1222 = vsub.s32 0, %v1221
    %v1223 = vrot.slane %v856, %v1222
    %v1224 = vadd.f32 %v1212, %v1223
    %v1225 = vadd.f32 %v1217, %v1223
    %v1226 = vmax.f32 %v1224, 0.0
    %v1227 = vmax.f32 %v1225, 0.0
    %v1228 = vld [vmem:[%s5 + $0x4] sm:$0x1]
    %v1229 = vld [vmem:[%s5 + $0x7] sm:$0x1]
    %s1230 = scalar_lea.vmem [#allocation2], 384
    %v1231 = vld [vmem:[%s1230] sm:$0xff]
    %v1232 = vld [vmem:[%s1230 + $0x8] sm:$0xff]
    %v1233 = vld [vmem:[%s1230 + $0x10] sm:$0xff]
    %v1234 = vld [vmem:[%s1230 + $0x18] sm:$0xff]
    %v1235 = vld [vmem:[%s1230 + $0x20] sm:$0xff]
    %v1236 = vld [vmem:[%s1230 + $0x28] sm:$0xff]
    %v1237 = vld [vmem:[%s1230 + $0x30] sm:$0xff]
    %v1238 = vld [vmem:[%s1230 + $0x38] sm:$0xff]
    %s1239 = scalar_lea.vmem [#allocation2], 448
    %v1240 = vld [vmem:[%s1239] sm:$0xff]
    %v1241 = vld [vmem:[%s1239 + $0x8] sm:$0xff]
    %v1242 = vld [vmem:[%s1239 + $0x10] sm:$0xff]
    %v1243 = vld [vmem:[%s1239 + $0x18] sm:$0xff]
    %v1244 = vld [vmem:[%s1239 + $0x20] sm:$0xff]
    %v1245 = vld [vmem:[%s1239 + $0x28] sm:$0xff]
    %v1246 = vld [vmem:[%s1239 + $0x30] sm:$0xff]
    %v1247 = vld [vmem:[%s1239 + $0x38] sm:$0xff]
    %s1248 = scalar_lea.vmem [#allocation2], 512
    %v1249 = vld [vmem:[%s1248] sm:$0xff]
    %v1250 = vld [vmem:[%s1248 + $0x8] sm:$0xff]
    %v1251 = vld [vmem:[%s1248 + $0x10] sm:$0xff]
    %v1252 = vld [vmem:[%s1248 + $0x18] sm:$0xff]
    %v1253 = vld [vmem:[%s1248 + $0x20] sm:$0xff]
    %v1254 = vld [vmem:[%s1248 + $0x28] sm:$0xff]
    %v1255 = vld [vmem:[%s1248 + $0x30] sm:$0xff]
    %v1256 = vld [vmem:[%s1248 + $0x38] sm:$0xff]
    %1257 = vmatprep.subr.mxu0 0.0
    %1258 = vmatpush1.msra.mxu0 %v1226
    %1259 = vmatprep.subr.mxu0 0.0
    %1260 = vmatpush1.msra.mxu0 %v1227
    %1261 = vmatprep.subr.mxu0 0.0
    %1262 = vmatpush1.msra.mxu0 0.0
    %1263 = vmatprep.subr.mxu0 0.0
    %1264 = vmatpush1.msra.mxu0 0.0
    %1265 = vmatprep.subr.mxu0 0.0
    %1266 = vmatpush1.msra.mxu0 0.0
    %1267 = vmatprep.subr.mxu0 0.0
    %1268 = vmatpush1.msra.mxu0 0.0
    %1269 = vmatprep.subr.mxu0 0.0
    %1270 = vmatpush1.msra.mxu0 0.0
    %1271 = vmatprep.subr.mxu0 0.0
    %1272 = vmatpush1.msra.mxu0 0.0
    %1273 = vmatprep.subr.mxu0 0.0
    %1274 = vmatpush1.msra.mxu0 0.0
    %1275 = vmatprep.subr.mxu0 0.0
    %1276 = vmatpush1.msra.mxu0 0.0
    %1277 = vmatprep.subr.mxu0 0.0
    %1278 = vmatpush1.msra.mxu0 0.0
    %1279 = vmatprep.subr.mxu0 0.0
    %1280 = vmatpush1.msra.mxu0 0.0
    %1281 = vmatprep.subr.mxu0 0.0
    %1282 = vmatpush1.msra.mxu0 0.0
    %1283 = vmatprep.subr.mxu0 0.0
    %1284 = vmatpush1.msra.mxu0 0.0
    %1285 = vmatprep.subr.mxu0 0.0
    %1286 = vmatpush1.msra.mxu0 0.0
    %1287 = vmatprep.subr.mxu0 0.0
    %1288 = vmatpush1.msra.mxu0 0.0
    %1289 = vmatprep.subr.mxu0 0.0
    %1290 = vmatpush1.msra.mxu0 0.0
    %1291 = vmatprep.subr.mxu0 0.0
    %1292 = vmatpush1.msra.mxu0 0.0
    %1293 = vmatprep.subr.mxu0 0.0
    %1294 = vmatpush1.msra.mxu0 0.0
    %1295 = vmatprep.subr.mxu0 0.0
    %1296 = vmatpush1.msra.mxu0 0.0
    %1297 = vmatprep.subr.mxu0 0.0
    %1298 = vmatpush1.msra.mxu0 0.0
    %1299 = vmatprep.subr.mxu0 0.0
    %1300 = vmatpush1.msra.mxu0 0.0
    %1301 = vmatprep.subr.mxu0 0.0
    %1302 = vmatpush1.msra.mxu0 0.0
    %1303 = vmatprep.subr.mxu0 0.0
    %1304 = vmatpush1.msra.mxu0 0.0
    %1305 = vmatprep.subr.mxu0 0.0
    %1306 = vmatpush1.msra.mxu0 0.0
    %1307 = vmatprep.subr.mxu0 0.0
    %1308 = vmatpush1.msra.mxu0 0.0
    %1309 = vmatprep.subr.mxu0 0.0
    %1310 = vmatpush1.msra.mxu0 0.0
    %1311 = vmatprep.subr.mxu0 0.0
    %1312 = vmatpush1.msra.mxu0 0.0
    %1313 = vmatprep.subr.mxu0 0.0
    %1314 = vmatpush1.msra.mxu0 0.0
    %1315 = vmatprep.subr.mxu0 0.0
    %1316 = vmatpush1.msra.mxu0 0.0
    %1317 = vmatprep.subr.mxu0 0.0
    %1318 = vmatpush1.msra.mxu0 0.0
    %1319 = vmatprep.subr.mxu0 0.0
    %1320 = vmatpush1.msra.mxu0 0.0
    %1321 = vmatprep.mubr.f32.mxu0 0.0
    %1322 = vmatmul.mubr.f32.gmra.mrb[0].mxu0 %v514
    %v1323 = vpop.f32.mrb[0].mxu0
    %v1324 = vadd.f32 0.0, %v1323
    %v1325 = vpop.f32.mrb[0].mxu0
    %1326 = vmatprep.mubr.f32.mxu0 0.0
    %1327 = vmatmul.mubr.f32.gmra.mrb[0].mxu0 %v517
    %v1328 = vpop.f32.mrb[0].mxu0
    %v1329 = vadd.f32 0.0, %v1328
    %v1330 = vpop.f32.mrb[0].mxu0
    %1331 = vdwg.mxu0
    %v1333 = vsel %vm401, %v1324, 0
    %v1336 = vsel %vm401, %v1329, 0
    %1338 = vmatprep.subr.mxu0 0.0
    %1339 = vmatpush1.msra.mxu0 %v1231
    %1340 = vmatprep.subr.mxu0 0.0
    %1341 = vmatpush1.msra.mxu0 %v1232
    %1342 = vmatprep.subr.mxu0 0.0
    %1343 = vmatpush1.msra.mxu0 %v1233
    %1344 = vmatprep.subr.mxu0 0.0
    %1345 = vmatpush1.msra.mxu0 %v1234
    %1346 = vmatprep.subr.mxu0 0.0
    %1347 = vmatpush1.msra.mxu0 %v1235
    %1348 = vmatprep.subr.mxu0 0.0
    %1349 = vmatpush1.msra.mxu0 %v1236
    %1350 = vmatprep.subr.mxu0 0.0
    %1351 = vmatpush1.msra.mxu0 %v1237
    %1352 = vmatprep.subr.mxu0 0.0
    %1353 = vmatpush1.msra.mxu0 %v1238
    %1354 = vmatprep.subr.mxu0 0.0
    %1355 = vmatpush1.msra.mxu0 0.0
    %1356 = vmatprep.subr.mxu0 0.0
    %1357 = vmatpush1.msra.mxu0 0.0
    %1358 = vmatprep.subr.mxu0 0.0
    %1359 = vmatpush1.msra.mxu0 0.0
    %1360 = vmatprep.subr.mxu0 0.0
    %1361 = vmatpush1.msra.mxu0 0.0
    %1362 = vmatprep.subr.mxu0 0.0
    %1363 = vmatpush1.msra.mxu0 0.0
    %1364 = vmatprep.subr.mxu0 0.0
    %1365 = vmatpush1.msra.mxu0 0.0
    %1366 = vmatprep.subr.mxu0 0.0
    %1367 = vmatpush1.msra.mxu0 0.0
    %1368 = vmatprep.subr.mxu0 0.0
    %1369 = vmatpush1.msra.mxu0 0.0
    %1370 = vmatprep.subr.mxu0 0.0
    %1371 = vmatpush1.msra.mxu0 0.0
    %1372 = vmatprep.subr.mxu0 0.0
    %1373 = vmatpush1.msra.mxu0 0.0
    %1374 = vmatprep.subr.mxu0 0.0
    %1375 = vmatpush1.msra.mxu0 0.0
    %1376 = vmatprep.subr.mxu0 0.0
    %1377 = vmatpush1.msra.mxu0 0.0
    %1378 = vmatprep.subr.mxu0 0.0
    %1379 = vmatpush1.msra.mxu0 0.0
    %1380 = vmatprep.subr.mxu0 0.0
    %1381 = vmatpush1.msra.mxu0 0.0
    %1382 = vmatprep.subr.mxu0 0.0
    %1383 = vmatpush1.msra.mxu0 0.0
    %1384 = vmatprep.subr.mxu0 0.0
    %1385 = vmatpush1.msra.mxu0 0.0
    %1386 = vmatprep.subr.mxu0 0.0
    %1387 = vmatpush1.msra.mxu0 0.0
    %1388 = vmatprep.subr.mxu0 0.0
    %1389 = vmatpush1.msra.mxu0 0.0
    %1390 = vmatprep.subr.mxu0 0.0
    %1391 = vmatpush1.msra.mxu0 0.0
    %1392 = vmatprep.subr.mxu0 0.0
    %1393 = vmatpush1.msra.mxu0 0.0
    %1394 = vmatprep.subr.mxu0 0.0
    %1395 = vmatpush1.msra.mxu0 0.0
    %1396 = vmatprep.subr.mxu0 0.0
    %1397 = vmatpush1.msra.mxu0 0.0
    %1398 = vmatprep.subr.mxu0 0.0
    %1399 = vmatpush1.msra.mxu0 0.0
    %1400 = vmatprep.subr.mxu0 0.0
    %1401 = vmatpush1.msra.mxu0 0.0
    %1402 = vmatprep.mubr.f32.mxu0 0.0
    %1403 = vmatmul.mubr.f32.gmra.mrb[0].mxu0 %v1333
    %v1404 = vpop.f32.mrb[0].mxu0
    %v1405 = vadd.f32 %v477, %v1404
    %v1406 = vpop.f32.mrb[0].mxu0
    %1407 = vmatprep.mubr.f32.mxu0 0.0
    %1408 = vmatmul.mubr.f32.gmra.mrb[0].mxu0 %v1336
    %v1409 = vpop.f32.mrb[0].mxu0
    %v1410 = vadd.f32 %v483, %v1409
    %v1411 = vpop.f32.mrb[0].mxu0
    %1412 = vdwg.mxu0
    %v1413 = vmul.f32 %v310, %v1405
    %v1414 = vmul.f32 %v312, %v1410
    %v1415 = vlaneseq
    %v1416 = vshrl.u32 %v1415, 7
    %v1417 = vsub.s32 0, %v1416
    %v1418 = vrot.slane %v1228, %v1417
    %v1419 = vmul.f32 %v317, %v1418
    %v1420 = vmul.f32 %v318, %v1418
    %v1421 = vadd.f32 %v1413, %v1419
    %v1422 = vadd.f32 %v1414, %v1420
    %v1424 = vsel %vm401, %v1421, 0
    %v1427 = vsel %vm401, %v1422, 0
    %1429 = vmatprep.subr.mxu0 0.0
    %1430 = vmatpush1.msra.mxu0 %v1249
    %1431 = vmatprep.subr.mxu0 0.0
    %1432 = vmatpush1.msra.mxu0 %v1250
    %1433 = vmatprep.subr.mxu0 0.0
    %1434 = vmatpush1.msra.mxu0 %v1251
    %1435 = vmatprep.subr.mxu0 0.0
    %1436 = vmatpush1.msra.mxu0 %v1252
    %1437 = vmatprep.subr.mxu0 0.0
    %1438 = vmatpush1.msra.mxu0 %v1253
    %1439 = vmatprep.subr.mxu0 0.0
    %1440 = vmatpush1.msra.mxu0 %v1254
    %1441 = vmatprep.subr.mxu0 0.0
    %1442 = vmatpush1.msra.mxu0 %v1255
    %1443 = vmatprep.subr.mxu0 0.0
    %1444 = vmatpush1.msra.mxu0 %v1256
    %1445 = vmatprep.subr.mxu0 0.0
    %1446 = vmatpush1.msra.mxu0 0.0
    %1447 = vmatprep.subr.mxu0 0.0
    %1448 = vmatpush1.msra.mxu0 0.0
    %1449 = vmatprep.subr.mxu0 0.0
    %1450 = vmatpush1.msra.mxu0 0.0
    %1451 = vmatprep.subr.mxu0 0.0
    %1452 = vmatpush1.msra.mxu0 0.0
    %1453 = vmatprep.subr.mxu0 0.0
    %1454 = vmatpush1.msra.mxu0 0.0
    %1455 = vmatprep.subr.mxu0 0.0
    %1456 = vmatpush1.msra.mxu0 0.0
    %1457 = vmatprep.subr.mxu0 0.0
    %1458 = vmatpush1.msra.mxu0 0.0
    %1459 = vmatprep.subr.mxu0 0.0
    %1460 = vmatpush1.msra.mxu0 0.0
    %1461 = vmatprep.subr.mxu0 0.0
    %1462 = vmatpush1.msra.mxu0 0.0
    %1463 = vmatprep.subr.mxu0 0.0
    %1464 = vmatpush1.msra.mxu0 0.0
    %1465 = vmatprep.subr.mxu0 0.0
    %1466 = vmatpush1.msra.mxu0 0.0
    %1467 = vmatprep.subr.mxu0 0.0
    %1468 = vmatpush1.msra.mxu0 0.0
    %1469 = vmatprep.subr.mxu0 0.0
    %1470 = vmatpush1.msra.mxu0 0.0
    %1471 = vmatprep.subr.mxu0 0.0
    %1472 = vmatpush1.msra.mxu0 0.0
    %1473 = vmatprep.subr.mxu0 0.0
    %1474 = vmatpush1.msra.mxu0 0.0
    %1475 = vmatprep.subr.mxu0 0.0
    %1476 = vmatpush1.msra.mxu0 0.0
    %1477 = vmatprep.subr.mxu0 0.0
    %1478 = vmatpush1.msra.mxu0 0.0
    %1479 = vmatprep.subr.mxu0 0.0
    %1480 = vmatpush1.msra.mxu0 0.0
    %1481 = vmatprep.subr.mxu0 0.0
    %1482 = vmatpush1.msra.mxu0 0.0
    %1483 = vmatprep.subr.mxu0 0.0
    %1484 = vmatpush1.msra.mxu0 0.0
    %1485 = vmatprep.subr.mxu0 0.0
    %1486 = vmatpush1.msra.mxu0 0.0
    %1487 = vmatprep.subr.mxu0 0.0
    %1488 = vmatpush1.msra.mxu0 0.0
    %1489 = vmatprep.subr.mxu0 0.0
    %1490 = vmatpush1.msra.mxu0 0.0
    %1491 = vmatprep.subr.mxu0 0.0
    %1492 = vmatpush1.msra.mxu0 0.0
    %1493 = vmatprep.mubr.f32.mxu0 0.0
    %1494 = vmatmul.mubr.f32.gmra.mrb[0].mxu0 %v1424
    %v1495 = vpop.f32.mrb[0].mxu0
    %v1496 = vadd.f32 0.0, %v1495
    %v1497 = vpop.f32.mrb[0].mxu0
    %1498 = vmatprep.mubr.f32.mxu0 0.0
    %1499 = vmatmul.mubr.f32.gmra.mrb[0].mxu0 %v1427
    %v1500 = vpop.f32.mrb[0].mxu0
    %v1501 = vadd.f32 0.0, %v1500
    %v1502 = vpop.f32.mrb[0].mxu0
    %1503 = vdwg.mxu0
    %v1505 = vsel %vm401, %v1226, 0
    %v1508 = vsel %vm401, %v1227, 0
    %1510 = vmatprep.subr.mxu0 0.0
    %1511 = vmatpush1.msra.mxu0 %v1240
    %1512 = vmatprep.subr.mxu0 0.0
    %1513 = vmatpush1.msra.mxu0 %v1241
    %1514 = vmatprep.subr.mxu0 0.0
    %1515 = vmatpush1.msra.mxu0 %v1242
    %1516 = vmatprep.subr.mxu0 0.0
    %1517 = vmatpush1.msra.mxu0 %v1243
    %1518 = vmatprep.subr.mxu0 0.0
    %1519 = vmatpush1.msra.mxu0 %v1244
    %1520 = vmatprep.subr.mxu0 0.0
    %1521 = vmatpush1.msra.mxu0 %v1245
    %1522 = vmatprep.subr.mxu0 0.0
    %1523 = vmatpush1.msra.mxu0 %v1246
    %1524 = vmatprep.subr.mxu0 0.0
    %1525 = vmatpush1.msra.mxu0 %v1247
    %1526 = vmatprep.subr.mxu0 0.0
    %1527 = vmatpush1.msra.mxu0 0.0
    %1528 = vmatprep.subr.mxu0 0.0
    %1529 = vmatpush1.msra.mxu0 0.0
    %1530 = vmatprep.subr.mxu0 0.0
    %1531 = vmatpush1.msra.mxu0 0.0
    %1532 = vmatprep.subr.mxu0 0.0
    %1533 = vmatpush1.msra.mxu0 0.0
    %1534 = vmatprep.subr.mxu0 0.0
    %1535 = vmatpush1.msra.mxu0 0.0
    %1536 = vmatprep.subr.mxu0 0.0
    %1537 = vmatpush1.msra.mxu0 0.0
    %1538 = vmatprep.subr.mxu0 0.0
    %1539 = vmatpush1.msra.mxu0 0.0
    %1540 = vmatprep.subr.mxu0 0.0
    %1541 = vmatpush1.msra.mxu0 0.0
    %1542 = vmatprep.subr.mxu0 0.0
    %1543 = vmatpush1.msra.mxu0 0.0
    %1544 = vmatprep.subr.mxu0 0.0
    %1545 = vmatpush1.msra.mxu0 0.0
    %1546 = vmatprep.subr.mxu0 0.0
    %1547 = vmatpush1.msra.mxu0 0.0
    %1548 = vmatprep.subr.mxu0 0.0
    %1549 = vmatpush1.msra.mxu0 0.0
    %1550 = vmatprep.subr.mxu0 0.0
    %1551 = vmatpush1.msra.mxu0 0.0
    %1552 = vmatprep.subr.mxu0 0.0
    %1553 = vmatpush1.msra.mxu0 0.0
    %1554 = vmatprep.subr.mxu0 0.0
    %1555 = vmatpush1.msra.mxu0 0.0
    %1556 = vmatprep.subr.mxu0 0.0
    %1557 = vmatpush1.msra.mxu0 0.0
    %1558 = vmatprep.subr.mxu0 0.0
    %1559 = vmatpush1.msra.mxu0 0.0
    %1560 = vmatprep.subr.mxu0 0.0
    %1561 = vmatpush1.msra.mxu0 0.0
    %1562 = vmatprep.subr.mxu0 0.0
    %1563 = vmatpush1.msra.mxu0 0.0
    %1564 = vmatprep.subr.mxu0 0.0
    %1565 = vmatpush1.msra.mxu0 0.0
    %1566 = vmatprep.subr.mxu0 0.0
    %1567 = vmatpush1.msra.mxu0 0.0
    %1568 = vmatprep.subr.mxu0 0.0
    %1569 = vmatpush1.msra.mxu0 0.0
    %1570 = vmatprep.subr.mxu0 0.0
    %1571 = vmatpush1.msra.mxu0 0.0
    %1572 = vmatprep.subr.mxu0 0.0
    %1573 = vmatpush1.msra.mxu0 0.0
    %1574 = vmatprep.mubr.f32.mxu0 0.0
    %1575 = vmatmul.mubr.f32.gmra.mrb[0].mxu0 %v1505
    %v1576 = vpop.f32.mrb[0].mxu0
    %v1577 = vadd.f32 %v1496, %v1576
    %v1578 = vpop.f32.mrb[0].mxu0
    %1579 = vmatprep.mubr.f32.mxu0 0.0
    %1580 = vmatmul.mubr.f32.gmra.mrb[0].mxu0 %v1508
    %v1581 = vpop.f32.mrb[0].mxu0
    %v1582 = vadd.f32 %v1501, %v1581
    %v1583 = vpop.f32.mrb[0].mxu0
    %1584 = vdwg.mxu0
    %v1585 = vlaneseq
    %v1586 = vshrl.u32 %v1585, 7
    %v1587 = vsub.s32 0, %v1586
    %v1588 = vrot.slane %v1229, %v1587
    %v1589 = vadd.f32 %v1577, %v1588
    %v1590 = vadd.f32 %v1582, %v1588
    %v1591 = vmax.f32 %v1589, 0.0
    %v1592 = vmax.f32 %v1590, 0.0
    %v1593 = vlaneseq
    %v1594 = vshrl.u32 %v1593, 7
    %v1595 = vsub.s32 0, %v1594
    %v1596 = vrot.slane %v63, %v1595
    %v1598 = vsel %vm401, %v1591, 0
    %v1601 = vsel %vm401, %v1592, 0
    %1603 = vmatprep.subr.mxu0 0.0
    %1604 = vmatpush1.msra.mxu0 %v64
    %1605 = vmatprep.subr.mxu0 0.0
    %1606 = vmatpush1.msra.mxu0 %v65
    %1607 = vmatprep.subr.mxu0 0.0
    %1608 = vmatpush1.msra.mxu0 %v66
    %1609 = vmatprep.subr.mxu0 0.0
    %1610 = vmatpush1.msra.mxu0 %v67
    %1611 = vmatprep.subr.mxu0 0.0
    %1612 = vmatpush1.msra.mxu0 %v68
    %1613 = vmatprep.subr.mxu0 0.0
    %1614 = vmatpush1.msra.mxu0 %v69
    %1615 = vmatprep.subr.mxu0 0.0
    %1616 = vmatpush1.msra.mxu0 %v70
    %1617 = vmatprep.subr.mxu0 0.0
    %1618 = vmatpush1.msra.mxu0 %v71
    %1619 = vmatprep.subr.mxu0 0.0
    %1620 = vmatpush1.msra.mxu0 0.0
    %1621 = vmatprep.subr.mxu0 0.0
    %1622 = vmatpush1.msra.mxu0 0.0
    %1623 = vmatprep.subr.mxu0 0.0
    %1624 = vmatpush1.msra.mxu0 0.0
    %1625 = vmatprep.subr.mxu0 0.0
    %1626 = vmatpush1.msra.mxu0 0.0
    %1627 = vmatprep.subr.mxu0 0.0
    %1628 = vmatpush1.msra.mxu0 0.0
    %1629 = vmatprep.subr.mxu0 0.0
    %1630 = vmatpush1.msra.mxu0 0.0
    %1631 = vmatprep.subr.mxu0 0.0
    %1632 = vmatpush1.msra.mxu0 0.0
    %1633 = vmatprep.subr.mxu0 0.0
    %1634 = vmatpush1.msra.mxu0 0.0
    %1635 = vmatprep.subr.mxu0 0.0
    %1636 = vmatpush1.msra.mxu0 0.0
    %1637 = vmatprep.subr.mxu0 0.0
    %1638 = vmatpush1.msra.mxu0 0.0
    %1639 = vmatprep.subr.mxu0 0.0
    %1640 = vmatpush1.msra.mxu0 0.0
    %1641 = vmatprep.subr.mxu0 0.0
    %1642 = vmatpush1.msra.mxu0 0.0
    %1643 = vmatprep.subr.mxu0 0.0
    %1644 = vmatpush1.msra.mxu0 0.0
    %1645 = vmatprep.subr.mxu0 0.0
    %1646 = vmatpush1.msra.mxu0 0.0
    %1647 = vmatprep.subr.mxu0 0.0
    %1648 = vmatpush1.msra.mxu0 0.0
    %1649 = vmatprep.subr.mxu0 0.0
    %1650 = vmatpush1.msra.mxu0 0.0
    %1651 = vmatprep.subr.mxu0 0.0
    %1652 = vmatpush1.msra.mxu0 0.0
    %1653 = vmatprep.subr.mxu0 0.0
    %1654 = vmatpush1.msra.mxu0 0.0
    %1655 = vmatprep.subr.mxu0 0.0
    %1656 = vmatpush1.msra.mxu0 0.0
    %1657 = vmatprep.subr.mxu0 0.0
    %1658 = vmatpush1.msra.mxu0 0.0
    %1659 = vmatprep.subr.mxu0 0.0
    %1660 = vmatpush1.msra.mxu0 0.0
    %1661 = vmatprep.subr.mxu0 0.0
    %1662 = vmatpush1.msra.mxu0 0.0
    %1663 = vmatprep.subr.mxu0 0.0
    %1664 = vmatpush1.msra.mxu0 0.0
    %1665 = vmatprep.subr.mxu0 0.0
    %1666 = vmatpush1.msra.mxu0 0.0
    %1667 = vmatprep.mubr.f32.mxu0 0.0
    %1668 = vmatmul.mubr.f32.gmra.mrb[0].mxu0 %v1598
    %v1669 = vpop.f32.mrb[0].mxu0
    %v1670 = vadd.f32 %v1596, %v1669
    %v1671 = vpop.f32.mrb[0].mxu0
    %1672 = vmatprep.mubr.f32.mxu0 0.0
    %1673 = vmatmul.mubr.f32.gmra.mrb[0].mxu0 %v1601
    %v1674 = vpop.f32.mrb[0].mxu0
    %v1675 = vadd.f32 %v1596, %v1674
    %v1676 = vpop.f32.mrb[0].mxu0
    %1677 = vdwg.mxu0
    %1678 = vst [vmem:[#allocation7] sm:$0xff] %v1670
    %1679 = vst [vmem:[#allocation7 + $0x8] sm:$0xff] %v1675
    // Predicated region
    $region42: #{tpu_custom_call.1} parent=1 // pred_check
      _
    $region43: #{tpu_custom_call.1} parent=1 // pred_check_branch
      %1681 = sbr.rel (0) target = $region45
    $region44: #{tpu_custom_call.1} parent=1 // pred_region
      %s1683 = ssub.s32 256, 256
      %1684 = vsyncadd [#allocation4], %s1683
      %s1685 = sshll.u32 [#allocation7], 4
      %s1686 = int_to_ptr.vmem [resolvable:$true] %s1685
      %1691 = dma.vmem_to_hbm [thread:$0]  %s1686, 256, %s8, [#allocation4], 128, 128, 8
    $region45: #{tpu_custom_call.1} parent=1 // pred_fallthru
      _
    // Predicated region
    $region46: #{tpu_custom_call.1} parent=1 // pred_check
      _
    $region47: #{tpu_custom_call.1} parent=1 // pred_check_branch
      %1693 = sbr.rel (0) target = $region49
    $region48: #{tpu_custom_call.1} parent=1 // pred_region
      %1694 = dma.done [#allocation4], 256
    $region49: #{tpu_custom_call.1} parent=1 // pred_fallthru
      _
    %1695 = vsyncpa [#allocation3], 1
    %1696 = vsyncpa [#allocation6], 1
    %1697 = vsyncpa [#allocation4], 1

</llo_original>
